<compile_context>
chip_gen: v7x
topology: tpu7x:2x2x1
jax: 0.10.0
libtpu: 0.0.40
codegen_flags: <defaults>
</compile_context>

<pallas_src>
import math
import functools

import jax
import jax.numpy as jnp
from jax.experimental import pallas as pl
from jax.experimental.pallas import tpu as pltpu


def _round_up(x, m):
    return ((x + m - 1) // m) * m


def _cdiv(a, b):
    return -(-a // b)


def _default_pack():
    """pack=8 on v5e (MXU-bound regime, 128x128 MXU), pack=16 elsewhere."""
    try:
        kind = jax.devices()[0].device_kind.lower()
    except Exception:
        return 16
    if ("v5 lite" in kind) or ("v5e" in kind) or ("v5lite" in kind):
        return 8
    return 16


def _mlp_kernel(nlayers, x_ref, *refs):
    """refs = (w0, b0, w1, b1, ..., w_{L-1}, b_{L-1}, out_ref).

    x_ref is f32 (cast to the MXU compute dtype here, inside the kernel); weights
    are in the compute dtype (bf16); biases are f32.  Bias add, leaky_relu and the
    final clamp run in f32; activations are cast back to the compute dtype only to
    feed the next MXU matmul.
    """
    out_ref = refs[-1]
    params = refs[:-1]
    compute_dtype = params[0].dtype

    h = x_ref[...].astype(compute_dtype)             # (tile_rows, pack*cin)
    for kl in range(nlayers):
        w = params[2 * kl][...]                      # (pack*in, pack*out), bf16
        b = params[2 * kl + 1][...]                  # (1, pack*out), f32
        y = jnp.dot(h, w, preferred_element_type=jnp.float32) + b   # f32 accumulate
        if kl < nlayers - 1:
            h = jnp.where(y >= 0, y, 0.01 * y).astype(compute_dtype)   # leaky_relu(0.01)
        else:
            out_ref[...] = jnp.clip(y, -1.0, 1.0).astype(out_ref.dtype)


def pack_pixel_pred_params(weights, biases, *, pack=16, compute_dtype=jnp.bfloat16):
    """Build the block-diagonal (kron) weights / tiled biases once, reusable per call."""
    eye = jnp.eye(pack, dtype=jnp.float32)
    flat = []
    for w, b in zip(weights, biases):
        flat.append(jnp.kron(eye, w).astype(compute_dtype))                 # (p*in, p*out)
        flat.append(jnp.tile(b.reshape(1, -1), (1, pack)).astype(jnp.float32))  # (1, p*out)
    return tuple(flat)


def pixel_pred_pallas(x2d, weights=None, biases=None, *, packed_params=None,
                      pack=None, block_rows=1024, compute_dtype=jnp.bfloat16,
                      out_dtype=None, min_grid_steps=2):
    """Fused MLP over the feature dim.

    x2d:        (M, nch[0]) float32 — flattened pixels x input features (kept f32;
                the bf16 cast happens inside the kernel).
    weights[k]: (nch[k], nch[k+1]) float32 (already (in, out) = nn.Linear weight.T).
    biases[k]:  (1, nch[k+1]) float32.
    packed_params: optional output of pack_pixel_pred_params (precompute once).
    """
    if pack is None:
        pack = _default_pack()
    if packed_params is None:
        packed_params = pack_pixel_pred_params(weights, biases, pack=pack,
                                               compute_dtype=compute_dtype)
    flat_params = list(packed_params)
    nlayers = len(flat_params) // 2

    M, cin = x2d.shape
    assert flat_params[0].shape[0] == pack * cin, "packed_params / pack / cin mismatch"
    cout = flat_params[-2].shape[1] // pack
    if out_dtype is None:
        out_dtype = x2d.dtype

    # ---- minimal padding: only up to a pack*16 sublane multiple ----------------
    rows = _cdiv(M, pack)
    rows_padded = _round_up(rows, 16)            # bf16 sublane packing is 16-deep
    m_padded = rows_padded * pack
    x_pad = x2d if m_padded == M else jnp.pad(x2d, ((0, m_padded - M), (0, 0)))
    x_packed = x_pad.reshape(rows_padded, pack * cin)          # stays f32

    # ---- tile selection: big tiles, multiple of 16, keep >=2 grid steps --------
    tile_rows = min(_round_up(max(block_rows, 16), 16), rows_padded)
    if _cdiv(rows_padded, tile_rows) < min_grid_steps and rows_padded >= 16 * min_grid_steps:
        tile_rows = min(_round_up(_cdiv(rows_padded, min_grid_steps), 16), rows_padded)
    grid = (_cdiv(rows_padded, tile_rows),)      # last block may be partial (masked)

    # ---- specs -----------------------------------------------------------------
    in_specs = [pl.BlockSpec((tile_rows, pack * cin), lambda i: (i, 0))]
    for kl in range(nlayers):
        w_p, b_p = flat_params[2 * kl], flat_params[2 * kl + 1]
        # Whole (small) parameter set resident in VMEM; constant index_map -> DMA'd once.
        in_specs.append(pl.BlockSpec(w_p.shape, lambda i: (0, 0)))
        in_specs.append(pl.BlockSpec(b_p.shape, lambda i: (0, 0)))
    out_spec = pl.BlockSpec((tile_rows, pack * cout), lambda i: (i, 0))

    kernel = functools.partial(_mlp_kernel, nlayers)

    out_packed = pl.pallas_call(
        kernel,
        out_shape=jax.ShapeDtypeStruct((rows_padded, pack * cout), out_dtype),
        grid_spec=pltpu.PrefetchScalarGridSpec(
            num_scalar_prefetch=0,
            grid=grid,
            in_specs=in_specs,
            out_specs=out_spec,
        ),
        compiler_params=pltpu.CompilerParams(
            dimension_semantics=("parallel",),            # shard grid steps across TCs
            vmem_limit_bytes=48 * 1024 * 1024,            # fits v7x 64 MiB, ample elsewhere
        ),
    )(x_packed, *flat_params)

    return out_packed.reshape(m_padded, cout)[:M]


def init_params(nch, key):
    """Deterministic init mimicking nn.Linear defaults: U(-1/sqrt(in), 1/sqrt(in))."""
    weights, biases = [], []
    for kl in range(1, len(nch)):
        fan_in, fan_out = nch[kl - 1], nch[kl]
        key, kw, kb = jax.random.split(key, 3)
        bound = 1.0 / math.sqrt(fan_in)
        w = jax.random.uniform(kw, (fan_in, fan_out), jnp.float32, -bound, bound)  # (in, out)
        b = jax.random.uniform(kb, (1, fan_out), jnp.float32, -bound, bound)
        weights.append(w)
        biases.append(b)
    return weights, biases


def pixel_pred_reference(x2d, weights, biases, compute_dtype=jnp.float32):
    """Plain-JAX reference with the same per-layer precision choices."""
    h = x2d.astype(compute_dtype)
    n = len(weights)
    for kl in range(n):
        y = jnp.dot(h, weights[kl].astype(compute_dtype),
                    preferred_element_type=jnp.float32) + biases[kl]
        if kl < n - 1:
            h = jnp.where(y >= 0, y, 0.01 * y).astype(compute_dtype)
        else:
            h = jnp.clip(y, -1.0, 1.0)
    return h


if __name__ == "__main__":
    # Small MLP: nch = [16, 32, 32, 8]; input = 2x16x16 "pixels" with 16 features each.
    nch = [16, 32, 32, 8]
    key = jax.random.PRNGKey(0)
    key, kx = jax.random.split(key)

    B, H, W = 2, 16, 16
    x = jax.random.normal(kx, (B, H, W, nch[0]), jnp.float32)   # NHWC-style pixel features

    weights, biases = init_params(nch, key)

    pack = _default_pack()
    packed = pack_pixel_pred_params(weights, biases, pack=pack)  # precompute once, reuse

    x2d = x.reshape(-1, nch[0])                                  # (M, 16), M = 512
    out2d = pixel_pred_pallas(x2d, packed_params=packed, pack=pack)
    out = out2d.reshape(B, H, W, nch[-1])
    out = jax.block_until_ready(out)

    # correctness vs. a matched-precision reference (bf16 matmul inputs, f32 epilogue)
    ref = pixel_pred_reference(x2d, weights, biases,
                               compute_dtype=jnp.bfloat16).reshape(B, H, W, nch[-1])
    assert jnp.allclose(out, ref, atol=1e-3, rtol=1e-3), "mismatch vs matched-precision reference"

    # loose sanity vs. full-f32 math (difference is only bf16 MXU input rounding)
    ref32 = pixel_pred_reference(x2d, weights, biases,
                                 compute_dtype=jnp.float32).reshape(B, H, W, nch[-1])
    assert jnp.allclose(out, ref32, atol=0.1, rtol=0.05), "mismatch vs f32 reference"

    print("KERNEL_OK")
</pallas_src>

<mosaic_0001>
module attributes {stable_mosaic.version = 11 : i64} {
  func.func @_mlp_kernel(%arg0: i32, %arg1: memref<16x256xf32, #tpu.memory_space<vmem>>, %arg2: memref<256x512xbf16, #tpu.memory_space<vmem>>, %arg3: memref<1x512xf32, #tpu.memory_space<vmem>>, %arg4: memref<512x512xbf16, #tpu.memory_space<vmem>>, %arg5: memref<1x512xf32, #tpu.memory_space<vmem>>, %arg6: memref<512x128xbf16, #tpu.memory_space<vmem>>, %arg7: memref<1x128xf32, #tpu.memory_space<vmem>>, %arg8: memref<16x128xf32, #tpu.memory_space<vmem>>) attributes {dimension_semantics = [#tpu.dimension_semantics<parallel>], iteration_bounds = array<i64: 2>, scalar_prefetch = 0 : i64, scratch_operands = 0 : i64, tpu.core_type = #tpu.core_type<tc>, window_params = [{transform_indices = @transform_0, window_bounds = array<i64: 16, 256>}, {pipeline_mode = #tpu.pipeline_mode<synchronous>, transform_indices = @transform_1, window_bounds = array<i64: 256, 512>}, {pipeline_mode = #tpu.pipeline_mode<synchronous>, transform_indices = @transform_2, window_bounds = array<i64: 1, 512>}, {pipeline_mode = #tpu.pipeline_mode<synchronous>, transform_indices = @transform_3, window_bounds = array<i64: 512, 512>}, {pipeline_mode = #tpu.pipeline_mode<synchronous>, transform_indices = @transform_4, window_bounds = array<i64: 1, 512>}, {pipeline_mode = #tpu.pipeline_mode<synchronous>, transform_indices = @transform_5, window_bounds = array<i64: 512, 128>}, {pipeline_mode = #tpu.pipeline_mode<synchronous>, transform_indices = @transform_6, window_bounds = array<i64: 1, 128>}, {transform_indices = @transform_7, window_bounds = array<i64: 16, 128>}]} {
    %c0 = arith.constant 0 : index
    %c0_0 = arith.constant 0 : index
    %0 = vector.load %arg1[%c0, %c0_0] : memref<16x256xf32, #tpu.memory_space<vmem>>, vector<16x256xf32>
    %1 = arith.truncf %0 : vector<16x256xf32> to vector<16x256xbf16>
    %c0_1 = arith.constant 0 : index
    %c0_2 = arith.constant 0 : index
    %2 = vector.load %arg2[%c0_1, %c0_2] : memref<256x512xbf16, #tpu.memory_space<vmem>>, vector<256x512xbf16>
    %c0_3 = arith.constant 0 : index
    %c0_4 = arith.constant 0 : index
    %3 = vector.load %arg3[%c0_3, %c0_4] : memref<1x512xf32, #tpu.memory_space<vmem>>, vector<1x512xf32>
    %cst = arith.constant dense<0.000000e+00> : vector<16x512xf32>
    %4 = tpu.matmul %1, %2, %cst {dimension_numbers = #tpu.dot_dimension_numbers<[1], [0], [0], [1], [0, 0, 1, 1], [], []>} : vector<16x256xbf16>, vector<256x512xbf16>, vector<16x512xf32> -> vector<16x512xf32>
    %5 = vector.broadcast %3 : vector<1x512xf32> to vector<16x512xf32>
    %6 = arith.addf %4, %5 : vector<16x512xf32>
    %cst_5 = arith.constant 0.000000e+00 : f32
    %7 = vector.broadcast %cst_5 : f32 to vector<16x512xf32>
    %8 = arith.cmpf oge, %6, %7 : vector<16x512xf32>
    %cst_6 = arith.constant 0.00999999977 : f32
    %9 = vector.broadcast %cst_6 : f32 to vector<16x512xf32>
    %10 = arith.mulf %9, %6 : vector<16x512xf32>
    %11 = arith.select %8, %6, %10 : vector<16x512xi1>, vector<16x512xf32>
    %12 = arith.truncf %11 : vector<16x512xf32> to vector<16x512xbf16>
    %c0_7 = arith.constant 0 : index
    %c0_8 = arith.constant 0 : index
    %13 = vector.load %arg4[%c0_7, %c0_8] : memref<512x512xbf16, #tpu.memory_space<vmem>>, vector<512x512xbf16>
    %c0_9 = arith.constant 0 : index
    %c0_10 = arith.constant 0 : index
    %14 = vector.load %arg5[%c0_9, %c0_10] : memref<1x512xf32, #tpu.memory_space<vmem>>, vector<1x512xf32>
    %cst_11 = arith.constant dense<0.000000e+00> : vector<16x512xf32>
    %15 = tpu.matmul %12, %13, %cst_11 {dimension_numbers = #tpu.dot_dimension_numbers<[1], [0], [0], [1], [0, 0, 1, 1], [], []>} : vector<16x512xbf16>, vector<512x512xbf16>, vector<16x512xf32> -> vector<16x512xf32>
    %16 = vector.broadcast %14 : vector<1x512xf32> to vector<16x512xf32>
    %17 = arith.addf %15, %16 : vector<16x512xf32>
    %cst_12 = arith.constant 0.000000e+00 : f32
    %18 = vector.broadcast %cst_12 : f32 to vector<16x512xf32>
    %19 = arith.cmpf oge, %17, %18 : vector<16x512xf32>
    %cst_13 = arith.constant 0.00999999977 : f32
    %20 = vector.broadcast %cst_13 : f32 to vector<16x512xf32>
    %21 = arith.mulf %20, %17 : vector<16x512xf32>
    %22 = arith.select %19, %17, %21 : vector<16x512xi1>, vector<16x512xf32>
    %23 = arith.truncf %22 : vector<16x512xf32> to vector<16x512xbf16>
    %c0_14 = arith.constant 0 : index
    %c0_15 = arith.constant 0 : index
    %24 = vector.load %arg6[%c0_14, %c0_15] : memref<512x128xbf16, #tpu.memory_space<vmem>>, vector<512x128xbf16>
    %c0_16 = arith.constant 0 : index
    %c0_17 = arith.constant 0 : index
    %25 = vector.load %arg7[%c0_16, %c0_17] : memref<1x128xf32, #tpu.memory_space<vmem>>, vector<1x128xf32>
    %cst_18 = arith.constant dense<0.000000e+00> : vector<16x128xf32>
    %26 = tpu.matmul %23, %24, %cst_18 {dimension_numbers = #tpu.dot_dimension_numbers<[1], [0], [0], [1], [0, 0, 1, 1], [], []>} : vector<16x512xbf16>, vector<512x128xbf16>, vector<16x128xf32> -> vector<16x128xf32>
    %27 = vector.broadcast %25 : vector<1x128xf32> to vector<16x128xf32>
    %28 = arith.addf %26, %27 : vector<16x128xf32>
    %cst_19 = arith.constant -1.000000e+00 : f32
    %cst_20 = arith.constant 1.000000e+00 : f32
    %29 = vector.broadcast %cst_19 : f32 to vector<16x128xf32>
    %30 = arith.maximumf %29, %28 : vector<16x128xf32>
    %31 = vector.broadcast %cst_20 : f32 to vector<16x128xf32>
    %32 = arith.minimumf %31, %30 : vector<16x128xf32>
    %c0_21 = arith.constant 0 : index
    %c0_22 = arith.constant 0 : index
    %33 = vector.load %arg8[%c0_21, %c0_22] : memref<16x128xf32, #tpu.memory_space<vmem>>, vector<16x128xf32>
    tpu.vector_store %arg8[%c0_21, %c0_22], %32 {strides = array<i32>} : memref<16x128xf32, #tpu.memory_space<vmem>>, vector<16x128xf32>,
    return
  }
  func.func @transform_0(%arg0: i32) -> (i32, i32) {
    %c0_i32 = arith.constant 0 : i32
    %c0_i32_0 = arith.constant 0 : i32
    return %arg0, %c0_i32 : i32, i32
  }
  func.func @transform_1(%arg0: i32) -> (i32, i32) {
    %c0_i32 = arith.constant 0 : i32
    %c0_i32_0 = arith.constant 0 : i32
    %c0_i32_1 = arith.constant 0 : i32
    return %c0_i32, %c0_i32_0 : i32, i32
  }
  func.func @transform_2(%arg0: i32) -> (i32, i32) {
    %c0_i32 = arith.constant 0 : i32
    %c0_i32_0 = arith.constant 0 : i32
    %c0_i32_1 = arith.constant 0 : i32
    return %c0_i32, %c0_i32_0 : i32, i32
  }
  func.func @transform_3(%arg0: i32) -> (i32, i32) {
    %c0_i32 = arith.constant 0 : i32
    %c0_i32_0 = arith.constant 0 : i32
    %c0_i32_1 = arith.constant 0 : i32
    return %c0_i32, %c0_i32_0 : i32, i32
  }
  func.func @transform_4(%arg0: i32) -> (i32, i32) {
    %c0_i32 = arith.constant 0 : i32
    %c0_i32_0 = arith.constant 0 : i32
    %c0_i32_1 = arith.constant 0 : i32
    return %c0_i32, %c0_i32_0 : i32, i32
  }
  func.func @transform_5(%arg0: i32) -> (i32, i32) {
    %c0_i32 = arith.constant 0 : i32
    %c0_i32_0 = arith.constant 0 : i32
    %c0_i32_1 = arith.constant 0 : i32
    return %c0_i32, %c0_i32_0 : i32, i32
  }
  func.func @transform_6(%arg0: i32) -> (i32, i32) {
    %c0_i32 = arith.constant 0 : i32
    %c0_i32_0 = arith.constant 0 : i32
    %c0_i32_1 = arith.constant 0 : i32
    return %c0_i32, %c0_i32_0 : i32, i32
  }
  func.func @transform_7(%arg0: i32) -> (i32, i32) {
    %c0_i32 = arith.constant 0 : i32
    %c0_i32_0 = arith.constant 0 : i32
    return %arg0, %c0_i32 : i32, i32
  }
}

</mosaic_0001>

<llo_original>
// kernel: tpu_custom_call.1
$region0: #{tpu_custom_call.1}
  #allocation0 [shape = 'u32[]', space=smem, size = 0x4, offset = 0x4, fixed_abs, tag = 'smem constant byte address 0x4 - core index']
  #allocation1 [shape = 'u32[144,128]{1,0:T(1,128)}', space=vmem, size = 0x12000, scoped, tag = 'internal scratch']
  %s0 = inlined_call_operand.hbm [shape: f32[32,256], index: 0, kind: input, shape index: {}]
  %s1 = inlined_call_operand.hbm [shape: bf16[256,512], index: 1, kind: input, shape index: {}]
  %s2 = inlined_call_operand.vmem [shape: f32[1,512], index: 2, kind: input, shape index: {}]
  %s3 = inlined_call_operand.hbm [shape: bf16[512,512], index: 3, kind: input, shape index: {}]
  %s4 = inlined_call_operand.vmem [shape: f32[1,512], index: 4, kind: input, shape index: {}]
  %s5 = inlined_call_operand.hbm [shape: bf16[512,128], index: 5, kind: input, shape index: {}]
  %s6 = inlined_call_operand.vmem [shape: f32[1,128], index: 6, kind: input, shape index: {}]
  %s7 = inlined_call_operand.hbm [shape: f32[32,128], index: 7, kind: output, shape index: {}]
  %s8 = sld [smem:[#allocation0]]
  $region77: #{tpu_custom_call.1} parent=0
    _
  %s10 = ssub.s32 1, %s8
  %s11 = scalar_select 0, %s10, %s8
  $region1: #{tpu_custom_call.1} parent=0
    #allocation2 [shape = 'u8[32768]{0}', space=vmem, size = 0x8000, scoped, tag = 'input window, operand 0']
    #allocation3 [shape = 's32[2]{0}', space=sflag, size = 0x8, scoped, tag = 'scoped memory for tpu_custom_call.1']
    #allocation4 [shape = 's32[2]{0}', space=sflag, size = 0x8, scoped, tag = 'scoped memory for tpu_custom_call.1']
    #allocation5 [shape = 'u8[262144]{0}', space=vmem, size = 0x40000, scoped, tag = 'input window, operand 1, single buffered']
    #allocation6 [shape = 's32[1]{0}', space=sflag, size = 0x4, scoped, tag = 'scoped memory for tpu_custom_call.1']
    #allocation7 [shape = 'u8[524288]{0}', space=vmem, size = 0x80000, scoped, tag = 'input window, operand 3, single buffered']
    #allocation8 [shape = 'u8[131072]{0}', space=vmem, size = 0x20000, scoped, tag = 'input window, operand 5, single buffered']
    #allocation9 [shape = 's32[1]{0}', space=sflag, size = 0x4, scoped, tag = 'scoped memory for tpu_custom_call.1']
    #allocation10 [shape = 'u8[16384]{0}', space=vmem, size = 0x4000, scoped, tag = 'output window, operand 0']
    %12 = vsyncpa [#allocation3], 0
    %s13 = scalar_lea.sflag [#allocation3], 1
    %14 = vsyncpa %s13, 0
    %15 = vsyncpa [#allocation6], 0
    %16 = vsyncpa [#allocation9], 0
    %17 = vsyncpa [#allocation4], 0
    %s18 = scalar_lea.sflag [#allocation4], 1
    %19 = vsyncpa %s18, 0
    loop: start=0, step=1, limit=4
    $region2: #{tpu_custom_call.1} parent=1 // loop_pre_header
      _
    $region3: #{tpu_custom_call.1} parent=1 // loop_header
      %s21 = sphi 0, %s25
      %p22 = scmp.ge.s32.totalorder %s21, 4
      %s31 = sphi 0, %s33
      %s34 = sphi 0, %s31
      %s35 = sphi 0, %s34
      %s51 = sphi 0, %s35
      %s55 = sphi 0, %s55
      %s57 = sphi 0, %s55
      %s58 = sphi 0, %s57
      %s72 = sphi 0, %s58
      %s76 = sphi 0, %s76
      %s78 = sphi 0, %s76
      %s79 = sphi 0, %s78
      %s93 = sphi 0, %s79
      %s97 = sphi 0, %s97
      %s99 = sphi 0, %s97
      %s100 = sphi 0, %s99
      %s114 = sphi 0, %s100
      %s118 = sphi 0, %s118
      %s120 = sphi 0, %s118
      %s121 = sphi 0, %s120
      %s135 = sphi 0, %s121
      %s139 = sphi 0, %s139
      %s141 = sphi 0, %s139
      %s142 = sphi 0, %s141
      %s156 = sphi 0, %s142
      %s160 = sphi 0, %s160
      %s162 = sphi 0, %s160
      %s163 = sphi 0, %s162
      %s177 = sphi 0, %s163
      %s183 = sphi 0, %s185
      %s186 = sphi 0, %s183
      %s187 = sphi 0, %s186
      %s203 = sphi 0, %s187
    $region4: #{tpu_custom_call.1} parent=1 // loop_header_branch
      %24 = sbr.rel (%p22) target = $region8
    $region5: #{tpu_custom_call.1} parent=1 // loop_body
      %s26 = ssub.s32 %s21, 1
      %s27 = ssub.s32 %s21, 2
      %s28 = sadd.s32 %s21, 1
      %s29 = ssub.s32 %s21, %s28
      %p30 = scmp.eq.s32.totalorder %s29, 0
      %s32 = sadd.s32 %s31, 1
      %s33 = scalar_select %p30, %s31, %s32
      %p36 = pneg %p30
      %p37 = scmp.eq.s32.totalorder %s21, 1
      %p38 = por %p36, %p37
      %p39 = scmp.ne.s32.totalorder %s31, %s34
      %p40 = scmp.eq.s32.totalorder %s21, 0
      %p41 = por %p39, %p40
      %p42 = scmp.ne.s32.totalorder %s31, %s34
      %p43 = scmp.eq.s32.totalorder %s26, 1
      %p44 = por %p42, %p43
      %p45 = scmp.ne.s32.totalorder %s34, %s35
      %p46 = scmp.eq.s32.totalorder %s26, 0
      %p47 = por %p45, %p46
      %p48 = scmp.ne.s32.totalorder %s34, %s35
      %p49 = scmp.eq.s32.totalorder %s27, 1
      %p50 = por %p48, %p49
      %p52 = scmp.ne.s32.totalorder %s35, %s51
      %p53 = scmp.eq.s32.totalorder %s27, 0
      %p54 = por %p52, %p53
      %s56 = sadd.s32 %s55, 1
      %p59 = scmp.eq.s32.totalorder %s21, 1
      %p60 = scmp.ne.s32.totalorder %s55, %s57
      %p61 = scmp.eq.s32.totalorder %s21, 0
      %p62 = por %p60, %p61
      %p63 = scmp.ne.s32.totalorder %s55, %s57
      %p64 = scmp.eq.s32.totalorder %s26, 1
      %p65 = por %p63, %p64
      %p66 = scmp.ne.s32.totalorder %s57, %s58
      %p67 = scmp.eq.s32.totalorder %s26, 0
      %p68 = por %p66, %p67
      %p69 = scmp.ne.s32.totalorder %s57, %s58
      %p70 = scmp.eq.s32.totalorder %s27, 1
      %p71 = por %p69, %p70
      %p73 = scmp.ne.s32.totalorder %s58, %s72
      %p74 = scmp.eq.s32.totalorder %s27, 0
      %p75 = por %p73, %p74
      %s77 = sadd.s32 %s76, 1
      %p80 = scmp.eq.s32.totalorder %s21, 1
      %p81 = scmp.ne.s32.totalorder %s76, %s78
      %p82 = scmp.eq.s32.totalorder %s21, 0
      %p83 = por %p81, %p82
      %p84 = scmp.ne.s32.totalorder %s76, %s78
      %p85 = scmp.eq.s32.totalorder %s26, 1
      %p86 = por %p84, %p85
      %p87 = scmp.ne.s32.totalorder %s78, %s79
      %p88 = scmp.eq.s32.totalorder %s26, 0
      %p89 = por %p87, %p88
      %p90 = scmp.ne.s32.totalorder %s78, %s79
      %p91 = scmp.eq.s32.totalorder %s27, 1
      %p92 = por %p90, %p91
      %p94 = scmp.ne.s32.totalorder %s79, %s93
      %p95 = scmp.eq.s32.totalorder %s27, 0
      %p96 = por %p94, %p95
      %s98 = sadd.s32 %s97, 1
      %p101 = scmp.eq.s32.totalorder %s21, 1
      %p102 = scmp.ne.s32.totalorder %s97, %s99
      %p103 = scmp.eq.s32.totalorder %s21, 0
      %p104 = por %p102, %p103
      %p105 = scmp.ne.s32.totalorder %s97, %s99
      %p106 = scmp.eq.s32.totalorder %s26, 1
      %p107 = por %p105, %p106
      %p108 = scmp.ne.s32.totalorder %s99, %s100
      %p109 = scmp.eq.s32.totalorder %s26, 0
      %p110 = por %p108, %p109
      %p111 = scmp.ne.s32.totalorder %s99, %s100
      %p112 = scmp.eq.s32.totalorder %s27, 1
      %p113 = por %p111, %p112
      %p115 = scmp.ne.s32.totalorder %s100, %s114
      %p116 = scmp.eq.s32.totalorder %s27, 0
      %p117 = por %p115, %p116
      %s119 = sadd.s32 %s118, 1
      %p122 = scmp.eq.s32.totalorder %s21, 1
      %p123 = scmp.ne.s32.totalorder %s118, %s120
      %p124 = scmp.eq.s32.totalorder %s21, 0
      %p125 = por %p123, %p124
      %p126 = scmp.ne.s32.totalorder %s118, %s120
      %p127 = scmp.eq.s32.totalorder %s26, 1
      %p128 = por %p126, %p127
      %p129 = scmp.ne.s32.totalorder %s120, %s121
      %p130 = scmp.eq.s32.totalorder %s26, 0
      %p131 = por %p129, %p130
      %p132 = scmp.ne.s32.totalorder %s120, %s121
      %p133 = scmp.eq.s32.totalorder %s27, 1
      %p134 = por %p132, %p133
      %p136 = scmp.ne.s32.totalorder %s121, %s135
      %p137 = scmp.eq.s32.totalorder %s27, 0
      %p138 = por %p136, %p137
      %s140 = sadd.s32 %s139, 1
      %p143 = scmp.eq.s32.totalorder %s21, 1
      %p144 = scmp.ne.s32.totalorder %s139, %s141
      %p145 = scmp.eq.s32.totalorder %s21, 0
      %p146 = por %p144, %p145
      %p147 = scmp.ne.s32.totalorder %s139, %s141
      %p148 = scmp.eq.s32.totalorder %s26, 1
      %p149 = por %p147, %p148
      %p150 = scmp.ne.s32.totalorder %s141, %s142
      %p151 = scmp.eq.s32.totalorder %s26, 0
      %p152 = por %p150, %p151
      %p153 = scmp.ne.s32.totalorder %s141, %s142
      %p154 = scmp.eq.s32.totalorder %s27, 1
      %p155 = por %p153, %p154
      %p157 = scmp.ne.s32.totalorder %s142, %s156
      %p158 = scmp.eq.s32.totalorder %s27, 0
      %p159 = por %p157, %p158
      %s161 = sadd.s32 %s160, 1
      %p164 = scmp.eq.s32.totalorder %s21, 1
      %p165 = scmp.ne.s32.totalorder %s160, %s162
      %p166 = scmp.eq.s32.totalorder %s21, 0
      %p167 = por %p165, %p166
      %p168 = scmp.ne.s32.totalorder %s160, %s162
      %p169 = scmp.eq.s32.totalorder %s26, 1
      %p170 = por %p168, %p169
      %p171 = scmp.ne.s32.totalorder %s162, %s163
      %p172 = scmp.eq.s32.totalorder %s26, 0
      %p173 = por %p171, %p172
      %p174 = scmp.ne.s32.totalorder %s162, %s163
      %p175 = scmp.eq.s32.totalorder %s27, 1
      %p176 = por %p174, %p175
      %p178 = scmp.ne.s32.totalorder %s163, %s177
      %p179 = scmp.eq.s32.totalorder %s27, 0
      %p180 = por %p178, %p179
      %s181 = ssub.s32 %s21, %s28
      %p182 = scmp.eq.s32.totalorder %s181, 0
      %s184 = sadd.s32 %s183, 1
      %s185 = scalar_select %p182, %s183, %s184
      %p188 = pneg %p182
      %p189 = scmp.eq.s32.totalorder %s21, 1
      %p190 = por %p188, %p189
      %p191 = scmp.ne.s32.totalorder %s183, %s186
      %p192 = scmp.eq.s32.totalorder %s21, 0
      %p193 = por %p191, %p192
      %p194 = scmp.ne.s32.totalorder %s183, %s186
      %p195 = scmp.eq.s32.totalorder %s26, 1
      %p196 = por %p194, %p195
      %p197 = scmp.ne.s32.totalorder %s186, %s187
      %p198 = scmp.eq.s32.totalorder %s26, 0
      %p199 = por %p197, %p198
      %p200 = scmp.ne.s32.totalorder %s186, %s187
      %p201 = scmp.eq.s32.totalorder %s27, 1
      %p202 = por %p200, %p201
      %p204 = scmp.ne.s32.totalorder %s187, %s203
      %p205 = scmp.eq.s32.totalorder %s27, 0
      %p206 = por %p204, %p205
      %p207 = scmp.le.s32.totalorder 1, %s21
      %p208 = scmp.lt.s32.totalorder %s21, 3
      %p209 = pnand %p207, %p208
      %p210 = pneg %p209
      // Predicated region
      $region9: #{tpu_custom_call.1} parent=5 // pred_check
        _
      $region10: #{tpu_custom_call.1} parent=5 // pred_check_branch
        %212 = sbr.rel (%p209) target = $region12
      $region11: #{tpu_custom_call.1} parent=5 // pred_region
        %s213 = ssub.s32 %s21, 1
        // Predicated region
        $region13: #{tpu_custom_call.1} parent=11 // pred_check
          %p214 = pneg %p68
        $region14: #{tpu_custom_call.1} parent=11 // pred_check_branch
          %216 = sbr.rel (%p214) target = $region16
        $region15: #{tpu_custom_call.1} parent=11 // pred_region
          %s218 = ssub.s32 8192, 8192
          %219 = vsyncadd [#allocation6], %s218
          %s220 = sshll.u32 [#allocation5], 4
          %s221 = int_to_ptr.vmem [resolvable:$true] %s220
          %226 = dma.hbm_to_vmem [thread:$0]  %s1, 8192, %s221, [#allocation6], 256, 256, 16
        $region16: #{tpu_custom_call.1} parent=11 // pred_fallthru
          _
        // Predicated region
        $region17: #{tpu_custom_call.1} parent=11 // pred_check
          %p227 = pneg %p89
        $region18: #{tpu_custom_call.1} parent=11 // pred_check_branch
          %229 = sbr.rel (%p227) target = $region20
        $region19: #{tpu_custom_call.1} parent=11 // pred_region
          _
        $region20: #{tpu_custom_call.1} parent=11 // pred_fallthru
          _
        // Predicated region
        $region21: #{tpu_custom_call.1} parent=11 // pred_check
          %p230 = pneg %p110
        $region22: #{tpu_custom_call.1} parent=11 // pred_check_branch
          %232 = sbr.rel (%p230) target = $region24
        $region23: #{tpu_custom_call.1} parent=11 // pred_region
          %s234 = ssub.s32 16384, 16384
          %235 = vsyncadd [#allocation6], %s234
          %s236 = sshll.u32 [#allocation7], 4
          %s237 = int_to_ptr.vmem [resolvable:$true] %s236
          %242 = dma.hbm_to_vmem [thread:$0]  %s3, 16384, %s237, [#allocation6], 256, 256, 16
        $region24: #{tpu_custom_call.1} parent=11 // pred_fallthru
          _
        // Predicated region
        $region25: #{tpu_custom_call.1} parent=11 // pred_check
          %p243 = pneg %p131
        $region26: #{tpu_custom_call.1} parent=11 // pred_check_branch
          %245 = sbr.rel (%p243) target = $region28
        $region27: #{tpu_custom_call.1} parent=11 // pred_region
          _
        $region28: #{tpu_custom_call.1} parent=11 // pred_fallthru
          _
        // Predicated region
        $region29: #{tpu_custom_call.1} parent=11 // pred_check
          %p246 = pneg %p152
        $region30: #{tpu_custom_call.1} parent=11 // pred_check_branch
          %248 = sbr.rel (%p246) target = $region32
        $region31: #{tpu_custom_call.1} parent=11 // pred_region
          %s250 = ssub.s32 4096, 4096
          %251 = vsyncadd [#allocation9], %s250
          %s252 = sshll.u32 [#allocation8], 4
          %s253 = int_to_ptr.vmem [resolvable:$true] %s252
          %258 = dma.hbm_to_vmem [thread:$0]  %s5, 4096, %s253, [#allocation9], 64, 64, 4
        $region32: #{tpu_custom_call.1} parent=11 // pred_fallthru
          _
        // Predicated region
        $region33: #{tpu_custom_call.1} parent=11 // pred_check
          %p259 = pneg %p173
        $region34: #{tpu_custom_call.1} parent=11 // pred_check_branch
          %261 = sbr.rel (%p259) target = $region36
        $region35: #{tpu_custom_call.1} parent=11 // pred_region
          _
        $region36: #{tpu_custom_call.1} parent=11 // pred_fallthru
          _
      $region12: #{tpu_custom_call.1} parent=5 // pred_fallthru
        _
      %p262 = scmp.lt.s32.totalorder %s21, 2
      // Predicated region
      $region37: #{tpu_custom_call.1} parent=5 // pred_check
        %p263 = pneg %p262
      $region38: #{tpu_custom_call.1} parent=5 // pred_check_branch
        %265 = sbr.rel (%p263) target = $region40
      $region39: #{tpu_custom_call.1} parent=5 // pred_region
        // Predicated region
        $region41: #{tpu_custom_call.1} parent=39 // pred_check
          %p266 = pneg %p41
        $region42: #{tpu_custom_call.1} parent=39 // pred_check_branch
          %268 = sbr.rel (%p266) target = $region44
        $region43: #{tpu_custom_call.1} parent=39 // pred_region
          %s269 = sand.u32 %s31, 1
          %s270 = scalar_lea.sflag [#allocation3], %s269
          %s271 = sand.u32 %s31, 1
          %s272 = smul.addr %s271, 32
          %s273 = scalar_lea.vmem [#allocation2], %s272
          %s274 = smul.u32 2, %s21
          %s276 = ssub.s32 512, 512
          %277 = vsyncadd %s270, %s276
          %s278 = smul.addr %s274, 2
          %s279 = smul.addr %s278, 128
          %s280 = scalar_lea.hbm %s0, %s279
          %s281 = sshll.u32 %s273, 4
          %s282 = int_to_ptr.vmem [resolvable:$true] %s281
          %287 = dma.hbm_to_vmem [thread:$0]  %s280, 512, %s282, %s270, 256, 256, 16
        $region44: #{tpu_custom_call.1} parent=39 // pred_fallthru
          _
      $region40: #{tpu_custom_call.1} parent=5 // pred_fallthru
        _
      %p288 = scmp.le.s32.totalorder 1, %s21
      %p289 = scmp.lt.s32.totalorder %s21, 3
      %p290 = pnand %p288, %p289
      %p291 = pneg %p290
      // Predicated region
      $region45: #{tpu_custom_call.1} parent=5 // pred_check
        _
      $region46: #{tpu_custom_call.1} parent=5 // pred_check_branch
        %293 = sbr.rel (%p290) target = $region48
      $region47: #{tpu_custom_call.1} parent=5 // pred_region
        %s294 = ssub.s32 %s21, 1
        %s295 = sand.u32 %s34, 1
        %s296 = scalar_lea.sflag [#allocation3], %s295
        %s297 = sand.u32 %s34, 1
        %s298 = smul.addr %s297, 32
        %s299 = scalar_lea.vmem [#allocation2], %s298
        // Predicated region
        $region49: #{tpu_custom_call.1} parent=47 // pred_check
          %p300 = pneg %p47
        $region50: #{tpu_custom_call.1} parent=47 // pred_check_branch
          %302 = sbr.rel (%p300) target = $region52
        $region51: #{tpu_custom_call.1} parent=47 // pred_region
          %303 = dma.done %s296, 512
        $region52: #{tpu_custom_call.1} parent=47 // pred_fallthru
          _
        // Predicated region
        $region53: #{tpu_custom_call.1} parent=47 // pred_check
          %p304 = pneg %p68
        $region54: #{tpu_custom_call.1} parent=47 // pred_check_branch
          %306 = sbr.rel (%p304) target = $region56
        $region55: #{tpu_custom_call.1} parent=47 // pred_region
          %307 = dma.done [#allocation6], 8192
        $region56: #{tpu_custom_call.1} parent=47 // pred_fallthru
          _
        // Predicated region
        $region57: #{tpu_custom_call.1} parent=47 // pred_check
          %p308 = pneg %p110
        $region58: #{tpu_custom_call.1} parent=47 // pred_check_branch
          %310 = sbr.rel (%p308) target = $region60
        $region59: #{tpu_custom_call.1} parent=47 // pred_region
          %311 = dma.done [#allocation6], 16384
        $region60: #{tpu_custom_call.1} parent=47 // pred_fallthru
          _
        // Predicated region
        $region61: #{tpu_custom_call.1} parent=47 // pred_check
          %p312 = pneg %p152
        $region62: #{tpu_custom_call.1} parent=47 // pred_check_branch
          %314 = sbr.rel (%p312) target = $region64
        $region63: #{tpu_custom_call.1} parent=47 // pred_region
          %315 = dma.done [#allocation9], 4096
        $region64: #{tpu_custom_call.1} parent=47 // pred_fallthru
          _
        %s316 = sand.u32 %s34, 1
        %s317 = scalar_lea.sflag [#allocation3], %s316
        %s318 = sand.u32 %s34, 1
        %s319 = smul.addr %s318, 32
        %s320 = scalar_lea.vmem [#allocation2], %s319
        %p321 = pneg %p47
        %p322 = pneg %p44
        %p323 = pneg %p68
        %p324 = pneg %p65
        %p325 = pneg %p89
        %p326 = pneg %p86
        %p327 = pneg %p110
        %p328 = pneg %p107
        %p329 = pneg %p131
        %p330 = pneg %p128
        %p331 = pneg %p152
        %p332 = pneg %p149
        %p333 = pneg %p173
        %p334 = pneg %p170
        %p335 = pneg %p199
        %p336 = pneg %p196
        %s337 = sand.u32 %s186, 1
        %s338 = scalar_lea.sflag [#allocation4], %s337
        %s339 = sand.u32 %s186, 1
        %s340 = smul.addr %s339, 16
        %s341 = scalar_lea.vmem [#allocation10], %s340
        %s342 = smul.u32 2, %s26
        %s343 = smul.u32 2, %s26
        %v345 = vld [vmem:[%s299] sm:$0xff]
        %v346 = vld [vmem:[%s299 + $0x8] sm:$0xff]
        %v347 = vld [vmem:[%s299 + $0x10] sm:$0xff]
        %v348 = vld [vmem:[%s299 + $0x18] sm:$0xff]
        %v349 = vpack.c.bf16 %v347, %v345
        %v350 = vpack.c.bf16 %v348, %v346
        %v351 = vld [vmem:[#allocation5] sm:$0xff]
        %v352 = vld [vmem:[#allocation5 + $0x8] sm:$0xff]
        %v353 = vld [vmem:[#allocation5 + $0x10] sm:$0xff]
        %v354 = vld [vmem:[#allocation5 + $0x18] sm:$0xff]
        %v355 = vld [vmem:[#allocation5 + $0x20] sm:$0xff]
        %v356 = vld [vmem:[#allocation5 + $0x28] sm:$0xff]
        %v357 = vld [vmem:[#allocation5 + $0x30] sm:$0xff]
        %v358 = vld [vmem:[#allocation5 + $0x38] sm:$0xff]
        %v359 = vld [vmem:[#allocation5 + $0x40] sm:$0xff]
        %v360 = vld [vmem:[#allocation5 + $0x48] sm:$0xff]
        %v361 = vld [vmem:[#allocation5 + $0x50] sm:$0xff]
        %v362 = vld [vmem:[#allocation5 + $0x58] sm:$0xff]
        %v363 = vld [vmem:[#allocation5 + $0x60] sm:$0xff]
        %v364 = vld [vmem:[#allocation5 + $0x68] sm:$0xff]
        %v365 = vld [vmem:[#allocation5 + $0x70] sm:$0xff]
        %v366 = vld [vmem:[#allocation5 + $0x78] sm:$0xff]
        %v367 = vld [vmem:[#allocation5 + $0x80] sm:$0xff]
        %v368 = vld [vmem:[#allocation5 + $0x88] sm:$0xff]
        %v369 = vld [vmem:[#allocation5 + $0x90] sm:$0xff]
        %v370 = vld [vmem:[#allocation5 + $0x98] sm:$0xff]
        %v371 = vld [vmem:[#allocation5 + $0xa0] sm:$0xff]
        %v372 = vld [vmem:[#allocation5 + $0xa8] sm:$0xff]
        %v373 = vld [vmem:[#allocation5 + $0xb0] sm:$0xff]
        %v374 = vld [vmem:[#allocation5 + $0xb8] sm:$0xff]
        %v375 = vld [vmem:[#allocation5 + $0xc0] sm:$0xff]
        %v376 = vld [vmem:[#allocation5 + $0xc8] sm:$0xff]
        %v377 = vld [vmem:[#allocation5 + $0xd0] sm:$0xff]
        %v378 = vld [vmem:[#allocation5 + $0xd8] sm:$0xff]
        %v379 = vld [vmem:[#allocation5 + $0xe0] sm:$0xff]
        %v380 = vld [vmem:[#allocation5 + $0xe8] sm:$0xff]
        %v381 = vld [vmem:[#allocation5 + $0xf0] sm:$0xff]
        %v382 = vld [vmem:[#allocation5 + $0xf8] sm:$0xff]
        %v383 = vld [vmem:[#allocation5 + $0x100] sm:$0xff]
        %v384 = vld [vmem:[#allocation5 + $0x108] sm:$0xff]
        %v385 = vld [vmem:[#allocation5 + $0x110] sm:$0xff]
        %v386 = vld [vmem:[#allocation5 + $0x118] sm:$0xff]
        %v387 = vld [vmem:[#allocation5 + $0x120] sm:$0xff]
        %v388 = vld [vmem:[#allocation5 + $0x128] sm:$0xff]
        %v389 = vld [vmem:[#allocation5 + $0x130] sm:$0xff]
        %v390 = vld [vmem:[#allocation5 + $0x138] sm:$0xff]
        %v391 = vld [vmem:[#allocation5 + $0x140] sm:$0xff]
        %v392 = vld [vmem:[#allocation5 + $0x148] sm:$0xff]
        %v393 = vld [vmem:[#allocation5 + $0x150] sm:$0xff]
        %v394 = vld [vmem:[#allocation5 + $0x158] sm:$0xff]
        %v395 = vld [vmem:[#allocation5 + $0x160] sm:$0xff]
        %v396 = vld [vmem:[#allocation5 + $0x168] sm:$0xff]
        %v397 = vld [vmem:[#allocation5 + $0x170] sm:$0xff]
        %v398 = vld [vmem:[#allocation5 + $0x178] sm:$0xff]
        %v399 = vld [vmem:[#allocation5 + $0x180] sm:$0xff]
        %v400 = vld [vmem:[#allocation5 + $0x188] sm:$0xff]
        %v401 = vld [vmem:[#allocation5 + $0x190] sm:$0xff]
        %v402 = vld [vmem:[#allocation5 + $0x198] sm:$0xff]
        %v403 = vld [vmem:[#allocation5 + $0x1a0] sm:$0xff]
        %v404 = vld [vmem:[#allocation5 + $0x1a8] sm:$0xff]
        %v405 = vld [vmem:[#allocation5 + $0x1b0] sm:$0xff]
        %v406 = vld [vmem:[#allocation5 + $0x1b8] sm:$0xff]
        %v407 = vld [vmem:[#allocation5 + $0x1c0] sm:$0xff]
        %v408 = vld [vmem:[#allocation5 + $0x1c8] sm:$0xff]
        %v409 = vld [vmem:[#allocation5 + $0x1d0] sm:$0xff]
        %v410 = vld [vmem:[#allocation5 + $0x1d8] sm:$0xff]
        %v411 = vld [vmem:[#allocation5 + $0x1e0] sm:$0xff]
        %v412 = vld [vmem:[#allocation5 + $0x1e8] sm:$0xff]
        %v413 = vld [vmem:[#allocation5 + $0x1f0] sm:$0xff]
        %v414 = vld [vmem:[#allocation5 + $0x1f8] sm:$0xff]
        %v415 = vld [vmem:[%s2] sm:$0xf]
        %v417 = vlaneseq
        %v418 = vshrl.u32 %v417, 7
        %v419 = vsub.s32 0, %v418
        %v420 = vrot.slane %v415, %v419
        %v421 = vlaneseq
        %v422 = vshrl.u32 %v421, 7
        %v423 = vsub.s32 1, %v422
        %v424 = vrot.slane %v415, %v423
        %v425 = vlaneseq
        %v426 = vshrl.u32 %v425, 7
        %v427 = vsub.s32 2, %v426
        %v428 = vrot.slane %v415, %v427
        %v429 = vlaneseq
        %v430 = vshrl.u32 %v429, 7
        %v431 = vsub.s32 3, %v430
        %v432 = vrot.slane %v415, %v431
        %v501 = vunpack.c.l.b16 %v351
        %v502 = vunpack.c.h.b16 %v351
        %v503 = vunpack.c.l.b16 %v352
        %v504 = vunpack.c.h.b16 %v352
        %v505 = vunpack.c.l.b16 %v353
        %v506 = vunpack.c.h.b16 %v353
        %v507 = vunpack.c.l.b16 %v354
        %v508 = vunpack.c.h.b16 %v354
        %v509 = vunpack.c.l.b16 %v355
        %v510 = vunpack.c.h.b16 %v355
        %v511 = vunpack.c.l.b16 %v356
        %v512 = vunpack.c.h.b16 %v356
        %v513 = vunpack.c.l.b16 %v357
        %v514 = vunpack.c.h.b16 %v357
        %v515 = vunpack.c.l.b16 %v358
        %v516 = vunpack.c.h.b16 %v358
        %v517 = vunpack.c.l.b16 %v359
        %v518 = vunpack.c.h.b16 %v359
        %v519 = vunpack.c.l.b16 %v360
        %v520 = vunpack.c.h.b16 %v360
        %v521 = vunpack.c.l.b16 %v361
        %v522 = vunpack.c.h.b16 %v361
        %v523 = vunpack.c.l.b16 %v362
        %v524 = vunpack.c.h.b16 %v362
        %v525 = vunpack.c.l.b16 %v363
        %v526 = vunpack.c.h.b16 %v363
        %v527 = vunpack.c.l.b16 %v364
        %v528 = vunpack.c.h.b16 %v364
        %v529 = vunpack.c.l.b16 %v365
        %v530 = vunpack.c.h.b16 %v365
        %v531 = vunpack.c.l.b16 %v366
        %v532 = vunpack.c.h.b16 %v366
        %v533 = vunpack.c.l.b16 %v367
        %v534 = vunpack.c.h.b16 %v367
        %v535 = vunpack.c.l.b16 %v368
        %v536 = vunpack.c.h.b16 %v368
        %v537 = vunpack.c.l.b16 %v369
        %v538 = vunpack.c.h.b16 %v369
        %v539 = vunpack.c.l.b16 %v370
        %v540 = vunpack.c.h.b16 %v370
        %v541 = vunpack.c.l.b16 %v371
        %v542 = vunpack.c.h.b16 %v371
        %v543 = vunpack.c.l.b16 %v372
        %v544 = vunpack.c.h.b16 %v372
        %v545 = vunpack.c.l.b16 %v373
        %v546 = vunpack.c.h.b16 %v373
        %v547 = vunpack.c.l.b16 %v374
        %v548 = vunpack.c.h.b16 %v374
        %v549 = vunpack.c.l.b16 %v375
        %v550 = vunpack.c.h.b16 %v375
        %v551 = vunpack.c.l.b16 %v376
        %v552 = vunpack.c.h.b16 %v376
        %v553 = vunpack.c.l.b16 %v377
        %v554 = vunpack.c.h.b16 %v377
        %v555 = vunpack.c.l.b16 %v378
        %v556 = vunpack.c.h.b16 %v378
        %v557 = vunpack.c.l.b16 %v379
        %v558 = vunpack.c.h.b16 %v379
        %v559 = vunpack.c.l.b16 %v380
        %v560 = vunpack.c.h.b16 %v380
        %v561 = vunpack.c.l.b16 %v381
        %v562 = vunpack.c.h.b16 %v381
        %v563 = vunpack.c.l.b16 %v382
        %v564 = vunpack.c.h.b16 %v382
        %v565 = vunpack.c.l.b16 %v383
        %v566 = vunpack.c.h.b16 %v383
        %v567 = vunpack.c.l.b16 %v384
        %v568 = vunpack.c.h.b16 %v384
        %v569 = vunpack.c.l.b16 %v385
        %v570 = vunpack.c.h.b16 %v385
        %v571 = vunpack.c.l.b16 %v386
        %v572 = vunpack.c.h.b16 %v386
        %v573 = vunpack.c.l.b16 %v387
        %v574 = vunpack.c.h.b16 %v387
        %v575 = vunpack.c.l.b16 %v388
        %v576 = vunpack.c.h.b16 %v388
        %v577 = vunpack.c.l.b16 %v389
        %v578 = vunpack.c.h.b16 %v389
        %v579 = vunpack.c.l.b16 %v390
        %v580 = vunpack.c.h.b16 %v390
        %v581 = vunpack.c.l.b16 %v391
        %v582 = vunpack.c.h.b16 %v391
        %v583 = vunpack.c.l.b16 %v392
        %v584 = vunpack.c.h.b16 %v392
        %v585 = vunpack.c.l.b16 %v393
        %v586 = vunpack.c.h.b16 %v393
        %v587 = vunpack.c.l.b16 %v394
        %v588 = vunpack.c.h.b16 %v394
        %v589 = vunpack.c.l.b16 %v395
        %v590 = vunpack.c.h.b16 %v395
        %v591 = vunpack.c.l.b16 %v396
        %v592 = vunpack.c.h.b16 %v396
        %v593 = vunpack.c.l.b16 %v397
        %v594 = vunpack.c.h.b16 %v397
        %v595 = vunpack.c.l.b16 %v398
        %v596 = vunpack.c.h.b16 %v398
        %v597 = vunpack.c.l.b16 %v399
        %v598 = vunpack.c.h.b16 %v399
        %v599 = vunpack.c.l.b16 %v400
        %v600 = vunpack.c.h.b16 %v400
        %v601 = vunpack.c.l.b16 %v401
        %v602 = vunpack.c.h.b16 %v401
        %v603 = vunpack.c.l.b16 %v402
        %v604 = vunpack.c.h.b16 %v402
        %v605 = vunpack.c.l.b16 %v403
        %v606 = vunpack.c.h.b16 %v403
        %v607 = vunpack.c.l.b16 %v404
        %v608 = vunpack.c.h.b16 %v404
        %v609 = vunpack.c.l.b16 %v405
        %v610 = vunpack.c.h.b16 %v405
        %v611 = vunpack.c.l.b16 %v406
        %v612 = vunpack.c.h.b16 %v406
        %v613 = vunpack.c.l.b16 %v407
        %v614 = vunpack.c.h.b16 %v407
        %v615 = vunpack.c.l.b16 %v408
        %v616 = vunpack.c.h.b16 %v408
        %v617 = vunpack.c.l.b16 %v409
        %v618 = vunpack.c.h.b16 %v409
        %v619 = vunpack.c.l.b16 %v410
        %v620 = vunpack.c.h.b16 %v410
        %v621 = vunpack.c.l.b16 %v411
        %v622 = vunpack.c.h.b16 %v411
        %v623 = vunpack.c.l.b16 %v412
        %v624 = vunpack.c.h.b16 %v412
        %v625 = vunpack.c.l.b16 %v413
        %v626 = vunpack.c.h.b16 %v413
        %v627 = vunpack.c.l.b16 %v414
        %v628 = vunpack.c.h.b16 %v414
        %v629 = vpack.c.b16 %v505, %v501
        %v630 = vpack.c.b16 %v506, %v502
        %v631 = vpack.c.b16 %v507, %v503
        %v632 = vpack.c.b16 %v508, %v504
        %v633 = vpack.c.b16 %v513, %v509
        %v634 = vpack.c.b16 %v514, %v510
        %v635 = vpack.c.b16 %v515, %v511
        %v636 = vpack.c.b16 %v516, %v512
        %v637 = vpack.c.b16 %v521, %v517
        %v638 = vpack.c.b16 %v522, %v518
        %v639 = vpack.c.b16 %v523, %v519
        %v640 = vpack.c.b16 %v524, %v520
        %v641 = vpack.c.b16 %v529, %v525
        %v642 = vpack.c.b16 %v530, %v526
        %v643 = vpack.c.b16 %v531, %v527
        %v644 = vpack.c.b16 %v532, %v528
        %v645 = vpack.c.b16 %v537, %v533
        %v646 = vpack.c.b16 %v538, %v534
        %v647 = vpack.c.b16 %v539, %v535
        %v648 = vpack.c.b16 %v540, %v536
        %v649 = vpack.c.b16 %v545, %v541
        %v650 = vpack.c.b16 %v546, %v542
        %v651 = vpack.c.b16 %v547, %v543
        %v652 = vpack.c.b16 %v548, %v544
        %v653 = vpack.c.b16 %v553, %v549
        %v654 = vpack.c.b16 %v554, %v550
        %v655 = vpack.c.b16 %v555, %v551
        %v656 = vpack.c.b16 %v556, %v552
        %v657 = vpack.c.b16 %v561, %v557
        %v658 = vpack.c.b16 %v562, %v558
        %v659 = vpack.c.b16 %v563, %v559
        %v660 = vpack.c.b16 %v564, %v560
        %v661 = vpack.c.b16 %v569, %v565
        %v662 = vpack.c.b16 %v570, %v566
        %v663 = vpack.c.b16 %v571, %v567
        %v664 = vpack.c.b16 %v572, %v568
        %v665 = vpack.c.b16 %v577, %v573
        %v666 = vpack.c.b16 %v578, %v574
        %v667 = vpack.c.b16 %v579, %v575
        %v668 = vpack.c.b16 %v580, %v576
        %v669 = vpack.c.b16 %v585, %v581
        %v670 = vpack.c.b16 %v586, %v582
        %v671 = vpack.c.b16 %v587, %v583
        %v672 = vpack.c.b16 %v588, %v584
        %v673 = vpack.c.b16 %v593, %v589
        %v674 = vpack.c.b16 %v594, %v590
        %v675 = vpack.c.b16 %v595, %v591
        %v676 = vpack.c.b16 %v596, %v592
        %v677 = vpack.c.b16 %v601, %v597
        %v678 = vpack.c.b16 %v602, %v598
        %v679 = vpack.c.b16 %v603, %v599
        %v680 = vpack.c.b16 %v604, %v600
        %v681 = vpack.c.b16 %v609, %v605
        %v682 = vpack.c.b16 %v610, %v606
        %v683 = vpack.c.b16 %v611, %v607
        %v684 = vpack.c.b16 %v612, %v608
        %v685 = vpack.c.b16 %v617, %v613
        %v686 = vpack.c.b16 %v618, %v614
        %v687 = vpack.c.b16 %v619, %v615
        %v688 = vpack.c.b16 %v620, %v616
        %v689 = vpack.c.b16 %v625, %v621
        %v690 = vpack.c.b16 %v626, %v622
        %v691 = vpack.c.b16 %v627, %v623
        %v692 = vpack.c.b16 %v628, %v624
        %757 = vmatprep.subr.bf16.mxu0 %v630
        %758 = vmatpush1.bf16.msra.mxu0 %v629
        %759 = vmatprep.subr.bf16.mxu0 %v634
        %760 = vmatpush1.bf16.msra.mxu0 %v633
        %761 = vmatprep.subr.bf16.mxu0 %v638
        %762 = vmatpush1.bf16.msra.mxu0 %v637
        %763 = vmatprep.subr.bf16.mxu0 %v642
        %764 = vmatpush1.bf16.msra.mxu0 %v641
        %765 = vmatprep.subr.bf16.mxu0 %v646
        %766 = vmatpush1.bf16.msra.mxu0 %v645
        %767 = vmatprep.subr.bf16.mxu0 %v650
        %768 = vmatpush1.bf16.msra.mxu0 %v649
        %769 = vmatprep.subr.bf16.mxu0 %v654
        %770 = vmatpush1.bf16.msra.mxu0 %v653
        %771 = vmatprep.subr.bf16.mxu0 %v658
        %772 = vmatpush1.bf16.msra.mxu0 %v657
        %773 = vmatprep.subr.bf16.mxu0 %v662
        %774 = vmatpush1.bf16.msra.mxu0 %v661
        %775 = vmatprep.subr.bf16.mxu0 %v666
        %776 = vmatpush1.bf16.msra.mxu0 %v665
        %777 = vmatprep.subr.bf16.mxu0 %v670
        %778 = vmatpush1.bf16.msra.mxu0 %v669
        %779 = vmatprep.subr.bf16.mxu0 %v674
        %780 = vmatpush1.bf16.msra.mxu0 %v673
        %781 = vmatprep.subr.bf16.mxu0 %v678
        %782 = vmatpush1.bf16.msra.mxu0 %v677
        %783 = vmatprep.subr.bf16.mxu0 %v682
        %784 = vmatpush1.bf16.msra.mxu0 %v681
        %785 = vmatprep.subr.bf16.mxu0 %v686
        %786 = vmatpush1.bf16.msra.mxu0 %v685
        %787 = vmatprep.subr.bf16.mxu0 %v690
        %788 = vmatpush1.bf16.msra.mxu0 %v689
        %789 = vmatprep.mubr.bf16.mxu0 %v350
        %790 = vmatmul.mubr.bf16.gmra.mrb[0].mxu0 %v349
        %v791 = vpop.f32.mrb[0].mxu0
        %v792 = vadd.f32 %v420, %v791
        %v793 = vpop.f32.mrb[0].mxu0
        %v794 = vadd.f32 %v424, %v793
        %v795 = vpop.f32.mrb[0].mxu0
        %v796 = vadd.f32 %v420, %v795
        %v797 = vpop.f32.mrb[0].mxu0
        %v798 = vadd.f32 %v424, %v797
        %799 = vdwg.mxu0
        %800 = vmatprep.subr.bf16.mxu0 %v632
        %801 = vmatpush1.bf16.msra.mxu0 %v631
        %802 = vmatprep.subr.bf16.mxu0 %v636
        %803 = vmatpush1.bf16.msra.mxu0 %v635
        %804 = vmatprep.subr.bf16.mxu0 %v640
        %805 = vmatpush1.bf16.msra.mxu0 %v639
        %806 = vmatprep.subr.bf16.mxu0 %v644
        %807 = vmatpush1.bf16.msra.mxu0 %v643
        %808 = vmatprep.subr.bf16.mxu0 %v648
        %809 = vmatpush1.bf16.msra.mxu0 %v647
        %810 = vmatprep.subr.bf16.mxu0 %v652
        %811 = vmatpush1.bf16.msra.mxu0 %v651
        %812 = vmatprep.subr.bf16.mxu0 %v656
        %813 = vmatpush1.bf16.msra.mxu0 %v655
        %814 = vmatprep.subr.bf16.mxu0 %v660
        %815 = vmatpush1.bf16.msra.mxu0 %v659
        %816 = vmatprep.subr.bf16.mxu0 %v664
        %817 = vmatpush1.bf16.msra.mxu0 %v663
        %818 = vmatprep.subr.bf16.mxu0 %v668
        %819 = vmatpush1.bf16.msra.mxu0 %v667
        %820 = vmatprep.subr.bf16.mxu0 %v672
        %821 = vmatpush1.bf16.msra.mxu0 %v671
        %822 = vmatprep.subr.bf16.mxu0 %v676
        %823 = vmatpush1.bf16.msra.mxu0 %v675
        %824 = vmatprep.subr.bf16.mxu0 %v680
        %825 = vmatpush1.bf16.msra.mxu0 %v679
        %826 = vmatprep.subr.bf16.mxu0 %v684
        %827 = vmatpush1.bf16.msra.mxu0 %v683
        %828 = vmatprep.subr.bf16.mxu0 %v688
        %829 = vmatpush1.bf16.msra.mxu0 %v687
        %830 = vmatprep.subr.bf16.mxu0 %v692
        %831 = vmatpush1.bf16.msra.mxu0 %v691
        %832 = vmatprep.mubr.bf16.mxu0 %v350
        %833 = vmatmul.mubr.bf16.gmra.mrb[0].mxu0 %v349
        %v834 = vpop.f32.mrb[0].mxu0
        %v835 = vadd.f32 %v428, %v834
        %v836 = vpop.f32.mrb[0].mxu0
        %v837 = vadd.f32 %v432, %v836
        %v838 = vpop.f32.mrb[0].mxu0
        %v839 = vadd.f32 %v428, %v838
        %v840 = vpop.f32.mrb[0].mxu0
        %v841 = vadd.f32 %v432, %v840
        %842 = vdwg.mxu0
        %vm843 = vcmp.ge.f32.partialorder %v792, 0.0
        %vm844 = vcmp.ge.f32.partialorder %v794, 0.0
        %vm845 = vcmp.ge.f32.partialorder %v835, 0.0
        %vm846 = vcmp.ge.f32.partialorder %v837, 0.0
        %vm847 = vcmp.ge.f32.partialorder %v796, 0.0
        %vm848 = vcmp.ge.f32.partialorder %v798, 0.0
        %vm849 = vcmp.ge.f32.partialorder %v839, 0.0
        %vm850 = vcmp.ge.f32.partialorder %v841, 0.0
        %v851 = vmul.f32 %v792, 0.01
        %v852 = vmul.f32 %v794, 0.01
        %v853 = vmul.f32 %v835, 0.01
        %v854 = vmul.f32 %v837, 0.01
        %v855 = vmul.f32 %v796, 0.01
        %v856 = vmul.f32 %v798, 0.01
        %v857 = vmul.f32 %v839, 0.01
        %v858 = vmul.f32 %v841, 0.01
        %v859 = vsel %vm843, %v792, %v851
        %v860 = vsel %vm844, %v794, %v852
        %v861 = vsel %vm845, %v835, %v853
        %v862 = vsel %vm846, %v837, %v854
        %v863 = vsel %vm847, %v796, %v855
        %v864 = vsel %vm848, %v798, %v856
        %v865 = vsel %vm849, %v839, %v857
        %v866 = vsel %vm850, %v841, %v858
        %v867 = vpack.c.bf16 %v863, %v859
        %v868 = vpack.c.bf16 %v864, %v860
        %v869 = vpack.c.bf16 %v865, %v861
        %v870 = vpack.c.bf16 %v866, %v862
        %v871 = vld [vmem:[#allocation7] sm:$0xff]
        %v872 = vld [vmem:[#allocation7 + $0x8] sm:$0xff]
        %v873 = vld [vmem:[#allocation7 + $0x10] sm:$0xff]
        %v874 = vld [vmem:[#allocation7 + $0x18] sm:$0xff]
        %v875 = vld [vmem:[#allocation7 + $0x20] sm:$0xff]
        %v876 = vld [vmem:[#allocation7 + $0x28] sm:$0xff]
        %v877 = vld [vmem:[#allocation7 + $0x30] sm:$0xff]
        %v878 = vld [vmem:[#allocation7 + $0x38] sm:$0xff]
        %v879 = vld [vmem:[#allocation7 + $0x40] sm:$0xff]
        %v880 = vld [vmem:[#allocation7 + $0x48] sm:$0xff]
        %v881 = vld [vmem:[#allocation7 + $0x50] sm:$0xff]
        %v882 = vld [vmem:[#allocation7 + $0x58] sm:$0xff]
        %v883 = vld [vmem:[#allocation7 + $0x60] sm:$0xff]
        %v884 = vld [vmem:[#allocation7 + $0x68] sm:$0xff]
        %v885 = vld [vmem:[#allocation7 + $0x70] sm:$0xff]
        %v886 = vld [vmem:[#allocation7 + $0x78] sm:$0xff]
        %v887 = vld [vmem:[#allocation7 + $0x80] sm:$0xff]
        %v888 = vld [vmem:[#allocation7 + $0x88] sm:$0xff]
        %v889 = vld [vmem:[#allocation7 + $0x90] sm:$0xff]
        %v890 = vld [vmem:[#allocation7 + $0x98] sm:$0xff]
        %v891 = vld [vmem:[#allocation7 + $0xa0] sm:$0xff]
        %v892 = vld [vmem:[#allocation7 + $0xa8] sm:$0xff]
        %v893 = vld [vmem:[#allocation7 + $0xb0] sm:$0xff]
        %v894 = vld [vmem:[#allocation7 + $0xb8] sm:$0xff]
        %v895 = vld [vmem:[#allocation7 + $0xc0] sm:$0xff]
        %v896 = vld [vmem:[#allocation7 + $0xc8] sm:$0xff]
        %v897 = vld [vmem:[#allocation7 + $0xd0] sm:$0xff]
        %v898 = vld [vmem:[#allocation7 + $0xd8] sm:$0xff]
        %v899 = vld [vmem:[#allocation7 + $0xe0] sm:$0xff]
        %v900 = vld [vmem:[#allocation7 + $0xe8] sm:$0xff]
        %v901 = vld [vmem:[#allocation7 + $0xf0] sm:$0xff]
        %v902 = vld [vmem:[#allocation7 + $0xf8] sm:$0xff]
        %v903 = vld [vmem:[#allocation7 + $0x100] sm:$0xff]
        %v904 = vld [vmem:[#allocation7 + $0x108] sm:$0xff]
        %v905 = vld [vmem:[#allocation7 + $0x110] sm:$0xff]
        %v906 = vld [vmem:[#allocation7 + $0x118] sm:$0xff]
        %v907 = vld [vmem:[#allocation7 + $0x120] sm:$0xff]
        %v908 = vld [vmem:[#allocation7 + $0x128] sm:$0xff]
        %v909 = vld [vmem:[#allocation7 + $0x130] sm:$0xff]
        %v910 = vld [vmem:[#allocation7 + $0x138] sm:$0xff]
        %v911 = vld [vmem:[#allocation7 + $0x140] sm:$0xff]
        %v912 = vld [vmem:[#allocation7 + $0x148] sm:$0xff]
        %v913 = vld [vmem:[#allocation7 + $0x150] sm:$0xff]
        %v914 = vld [vmem:[#allocation7 + $0x158] sm:$0xff]
        %v915 = vld [vmem:[#allocation7 + $0x160] sm:$0xff]
        %v916 = vld [vmem:[#allocation7 + $0x168] sm:$0xff]
        %v917 = vld [vmem:[#allocation7 + $0x170] sm:$0xff]
        %v918 = vld [vmem:[#allocation7 + $0x178] sm:$0xff]
        %v919 = vld [vmem:[#allocation7 + $0x180] sm:$0xff]
        %v920 = vld [vmem:[#allocation7 + $0x188] sm:$0xff]
        %v921 = vld [vmem:[#allocation7 + $0x190] sm:$0xff]
        %v922 = vld [vmem:[#allocation7 + $0x198] sm:$0xff]
        %v923 = vld [vmem:[#allocation7 + $0x1a0] sm:$0xff]
        %v924 = vld [vmem:[#allocation7 + $0x1a8] sm:$0xff]
        %v925 = vld [vmem:[#allocation7 + $0x1b0] sm:$0xff]
        %v926 = vld [vmem:[#allocation7 + $0x1b8] sm:$0xff]
        %v927 = vld [vmem:[#allocation7 + $0x1c0] sm:$0xff]
        %v928 = vld [vmem:[#allocation7 + $0x1c8] sm:$0xff]
        %v929 = vld [vmem:[#allocation7 + $0x1d0] sm:$0xff]
        %v930 = vld [vmem:[#allocation7 + $0x1d8] sm:$0xff]
        %v931 = vld [vmem:[#allocation7 + $0x1e0] sm:$0xff]
        %v932 = vld [vmem:[#allocation7 + $0x1e8] sm:$0xff]
        %v933 = vld [vmem:[#allocation7 + $0x1f0] sm:$0xff]
        %v934 = vld [vmem:[#allocation7 + $0x1f8] sm:$0xff]
        %v935 = vld [vmem:[#allocation7 + $0x200] sm:$0xff]
        %v936 = vld [vmem:[#allocation7 + $0x208] sm:$0xff]
        %v937 = vld [vmem:[#allocation7 + $0x210] sm:$0xff]
        %v938 = vld [vmem:[#allocation7 + $0x218] sm:$0xff]
        %v939 = vld [vmem:[#allocation7 + $0x220] sm:$0xff]
        %v940 = vld [vmem:[#allocation7 + $0x228] sm:$0xff]
        %v941 = vld [vmem:[#allocation7 + $0x230] sm:$0xff]
        %v942 = vld [vmem:[#allocation7 + $0x238] sm:$0xff]
        %v943 = vld [vmem:[#allocation7 + $0x240] sm:$0xff]
        %v944 = vld [vmem:[#allocation7 + $0x248] sm:$0xff]
        %v945 = vld [vmem:[#allocation7 + $0x250] sm:$0xff]
        %v946 = vld [vmem:[#allocation7 + $0x258] sm:$0xff]
        %v947 = vld [vmem:[#allocation7 + $0x260] sm:$0xff]
        %v948 = vld [vmem:[#allocation7 + $0x268] sm:$0xff]
        %v949 = vld [vmem:[#allocation7 + $0x270] sm:$0xff]
        %v950 = vld [vmem:[#allocation7 + $0x278] sm:$0xff]
        %v951 = vld [vmem:[#allocation7 + $0x280] sm:$0xff]
        %v952 = vld [vmem:[#allocation7 + $0x288] sm:$0xff]
        %v953 = vld [vmem:[#allocation7 + $0x290] sm:$0xff]
        %v954 = vld [vmem:[#allocation7 + $0x298] sm:$0xff]
        %v955 = vld [vmem:[#allocation7 + $0x2a0] sm:$0xff]
        %v956 = vld [vmem:[#allocation7 + $0x2a8] sm:$0xff]
        %v957 = vld [vmem:[#allocation7 + $0x2b0] sm:$0xff]
        %v958 = vld [vmem:[#allocation7 + $0x2b8] sm:$0xff]
        %v959 = vld [vmem:[#allocation7 + $0x2c0] sm:$0xff]
        %v960 = vld [vmem:[#allocation7 + $0x2c8] sm:$0xff]
        %v961 = vld [vmem:[#allocation7 + $0x2d0] sm:$0xff]
        %v962 = vld [vmem:[#allocation7 + $0x2d8] sm:$0xff]
        %v963 = vld [vmem:[#allocation7 + $0x2e0] sm:$0xff]
        %v964 = vld [vmem:[#allocation7 + $0x2e8] sm:$0xff]
        %v965 = vld [vmem:[#allocation7 + $0x2f0] sm:$0xff]
        %v966 = vld [vmem:[#allocation7 + $0x2f8] sm:$0xff]
        %v967 = vld [vmem:[#allocation7 + $0x300] sm:$0xff]
        %v968 = vld [vmem:[#allocation7 + $0x308] sm:$0xff]
        %v969 = vld [vmem:[#allocation7 + $0x310] sm:$0xff]
        %v970 = vld [vmem:[#allocation7 + $0x318] sm:$0xff]
        %v971 = vld [vmem:[#allocation7 + $0x320] sm:$0xff]
        %v972 = vld [vmem:[#allocation7 + $0x328] sm:$0xff]
        %v973 = vld [vmem:[#allocation7 + $0x330] sm:$0xff]
        %v974 = vld [vmem:[#allocation7 + $0x338] sm:$0xff]
        %v975 = vld [vmem:[#allocation7 + $0x340] sm:$0xff]
        %v976 = vld [vmem:[#allocation7 + $0x348] sm:$0xff]
        %v977 = vld [vmem:[#allocation7 + $0x350] sm:$0xff]
        %v978 = vld [vmem:[#allocation7 + $0x358] sm:$0xff]
        %v979 = vld [vmem:[#allocation7 + $0x360] sm:$0xff]
        %v980 = vld [vmem:[#allocation7 + $0x368] sm:$0xff]
        %v981 = vld [vmem:[#allocation7 + $0x370] sm:$0xff]
        %v982 = vld [vmem:[#allocation7 + $0x378] sm:$0xff]
        %v983 = vld [vmem:[#allocation7 + $0x380] sm:$0xff]
        %v984 = vld [vmem:[#allocation7 + $0x388] sm:$0xff]
        %v985 = vld [vmem:[#allocation7 + $0x390] sm:$0xff]
        %v986 = vld [vmem:[#allocation7 + $0x398] sm:$0xff]
        %v987 = vld [vmem:[#allocation7 + $0x3a0] sm:$0xff]
        %v988 = vld [vmem:[#allocation7 + $0x3a8] sm:$0xff]
        %v989 = vld [vmem:[#allocation7 + $0x3b0] sm:$0xff]
        %v990 = vld [vmem:[#allocation7 + $0x3b8] sm:$0xff]
        %v991 = vld [vmem:[#allocation7 + $0x3c0] sm:$0xff]
        %v992 = vld [vmem:[#allocation7 + $0x3c8] sm:$0xff]
        %v993 = vld [vmem:[#allocation7 + $0x3d0] sm:$0xff]
        %v994 = vld [vmem:[#allocation7 + $0x3d8] sm:$0xff]
        %v995 = vld [vmem:[#allocation7 + $0x3e0] sm:$0xff]
        %v996 = vld [vmem:[#allocation7 + $0x3e8] sm:$0xff]
        %v997 = vld [vmem:[#allocation7 + $0x3f0] sm:$0xff]
        %v998 = vld [vmem:[#allocation7 + $0x3f8] sm:$0xff]
        %v999 = vld [vmem:[%s4] sm:$0xf]
        %v1001 = vlaneseq
        %v1002 = vshrl.u32 %v1001, 7
        %v1003 = vsub.s32 0, %v1002
        %v1004 = vrot.slane %v999, %v1003
        %v1005 = vlaneseq
        %v1006 = vshrl.u32 %v1005, 7
        %v1007 = vsub.s32 1, %v1006
        %v1008 = vrot.slane %v999, %v1007
        %v1009 = vlaneseq
        %v1010 = vshrl.u32 %v1009, 7
        %v1011 = vsub.s32 2, %v1010
        %v1012 = vrot.slane %v999, %v1011
        %v1013 = vlaneseq
        %v1014 = vshrl.u32 %v1013, 7
        %v1015 = vsub.s32 3, %v1014
        %v1016 = vrot.slane %v999, %v1015
        %v1149 = vunpack.c.l.b16 %v871
        %v1150 = vunpack.c.h.b16 %v871
        %v1151 = vunpack.c.l.b16 %v872
        %v1152 = vunpack.c.h.b16 %v872
        %v1153 = vunpack.c.l.b16 %v873
        %v1154 = vunpack.c.h.b16 %v873
        %v1155 = vunpack.c.l.b16 %v874
        %v1156 = vunpack.c.h.b16 %v874
        %v1157 = vunpack.c.l.b16 %v875
        %v1158 = vunpack.c.h.b16 %v875
        %v1159 = vunpack.c.l.b16 %v876
        %v1160 = vunpack.c.h.b16 %v876
        %v1161 = vunpack.c.l.b16 %v877
        %v1162 = vunpack.c.h.b16 %v877
        %v1163 = vunpack.c.l.b16 %v878
        %v1164 = vunpack.c.h.b16 %v878
        %v1165 = vunpack.c.l.b16 %v879
        %v1166 = vunpack.c.h.b16 %v879
        %v1167 = vunpack.c.l.b16 %v880
        %v1168 = vunpack.c.h.b16 %v880
        %v1169 = vunpack.c.l.b16 %v881
        %v1170 = vunpack.c.h.b16 %v881
        %v1171 = vunpack.c.l.b16 %v882
        %v1172 = vunpack.c.h.b16 %v882
        %v1173 = vunpack.c.l.b16 %v883
        %v1174 = vunpack.c.h.b16 %v883
        %v1175 = vunpack.c.l.b16 %v884
        %v1176 = vunpack.c.h.b16 %v884
        %v1177 = vunpack.c.l.b16 %v885
        %v1178 = vunpack.c.h.b16 %v885
        %v1179 = vunpack.c.l.b16 %v886
        %v1180 = vunpack.c.h.b16 %v886
        %v1181 = vunpack.c.l.b16 %v887
        %v1182 = vunpack.c.h.b16 %v887
        %v1183 = vunpack.c.l.b16 %v888
        %v1184 = vunpack.c.h.b16 %v888
        %v1185 = vunpack.c.l.b16 %v889
        %v1186 = vunpack.c.h.b16 %v889
        %v1187 = vunpack.c.l.b16 %v890
        %v1188 = vunpack.c.h.b16 %v890
        %v1189 = vunpack.c.l.b16 %v891
        %v1190 = vunpack.c.h.b16 %v891
        %v1191 = vunpack.c.l.b16 %v892
        %v1192 = vunpack.c.h.b16 %v892
        %v1193 = vunpack.c.l.b16 %v893
        %v1194 = vunpack.c.h.b16 %v893
        %v1195 = vunpack.c.l.b16 %v894
        %v1196 = vunpack.c.h.b16 %v894
        %v1197 = vunpack.c.l.b16 %v895
        %v1198 = vunpack.c.h.b16 %v895
        %v1199 = vunpack.c.l.b16 %v896
        %v1200 = vunpack.c.h.b16 %v896
        %v1201 = vunpack.c.l.b16 %v897
        %v1202 = vunpack.c.h.b16 %v897
        %v1203 = vunpack.c.l.b16 %v898
        %v1204 = vunpack.c.h.b16 %v898
        %v1205 = vunpack.c.l.b16 %v899
        %v1206 = vunpack.c.h.b16 %v899
        %v1207 = vunpack.c.l.b16 %v900
        %v1208 = vunpack.c.h.b16 %v900
        %v1209 = vunpack.c.l.b16 %v901
        %v1210 = vunpack.c.h.b16 %v901
        %v1211 = vunpack.c.l.b16 %v902
        %v1212 = vunpack.c.h.b16 %v902
        %v1213 = vunpack.c.l.b16 %v903
        %v1214 = vunpack.c.h.b16 %v903
        %v1215 = vunpack.c.l.b16 %v904
        %v1216 = vunpack.c.h.b16 %v904
        %v1217 = vunpack.c.l.b16 %v905
        %v1218 = vunpack.c.h.b16 %v905
        %v1219 = vunpack.c.l.b16 %v906
        %v1220 = vunpack.c.h.b16 %v906
        %v1221 = vunpack.c.l.b16 %v907
        %v1222 = vunpack.c.h.b16 %v907
        %v1223 = vunpack.c.l.b16 %v908
        %v1224 = vunpack.c.h.b16 %v908
        %v1225 = vunpack.c.l.b16 %v909
        %v1226 = vunpack.c.h.b16 %v909
        %v1227 = vunpack.c.l.b16 %v910
        %v1228 = vunpack.c.h.b16 %v910
        %v1229 = vunpack.c.l.b16 %v911
        %v1230 = vunpack.c.h.b16 %v911
        %v1231 = vunpack.c.l.b16 %v912
        %v1232 = vunpack.c.h.b16 %v912
        %v1233 = vunpack.c.l.b16 %v913
        %v1234 = vunpack.c.h.b16 %v913
        %v1235 = vunpack.c.l.b16 %v914
        %v1236 = vunpack.c.h.b16 %v914
        %v1237 = vunpack.c.l.b16 %v915
        %v1238 = vunpack.c.h.b16 %v915
        %v1239 = vunpack.c.l.b16 %v916
        %v1240 = vunpack.c.h.b16 %v916
        %v1241 = vunpack.c.l.b16 %v917
        %v1242 = vunpack.c.h.b16 %v917
        %v1243 = vunpack.c.l.b16 %v918
        %v1244 = vunpack.c.h.b16 %v918
        %v1245 = vunpack.c.l.b16 %v919
        %v1246 = vunpack.c.h.b16 %v919
        %v1247 = vunpack.c.l.b16 %v920
        %v1248 = vunpack.c.h.b16 %v920
        %v1249 = vunpack.c.l.b16 %v921
        %v1250 = vunpack.c.h.b16 %v921
        %v1251 = vunpack.c.l.b16 %v922
        %v1252 = vunpack.c.h.b16 %v922
        %v1253 = vunpack.c.l.b16 %v923
        %v1254 = vunpack.c.h.b16 %v923
        %v1255 = vunpack.c.l.b16 %v924
        %v1256 = vunpack.c.h.b16 %v924
        %v1257 = vunpack.c.l.b16 %v925
        %v1258 = vunpack.c.h.b16 %v925
        %v1259 = vunpack.c.l.b16 %v926
        %v1260 = vunpack.c.h.b16 %v926
        %v1261 = vunpack.c.l.b16 %v927
        %v1262 = vunpack.c.h.b16 %v927
        %v1263 = vunpack.c.l.b16 %v928
        %v1264 = vunpack.c.h.b16 %v928
        %v1265 = vunpack.c.l.b16 %v929
        %v1266 = vunpack.c.h.b16 %v929
        %v1267 = vunpack.c.l.b16 %v930
        %v1268 = vunpack.c.h.b16 %v930
        %v1269 = vunpack.c.l.b16 %v931
        %v1270 = vunpack.c.h.b16 %v931
        %v1271 = vunpack.c.l.b16 %v932
        %v1272 = vunpack.c.h.b16 %v932
        %v1273 = vunpack.c.l.b16 %v933
        %v1274 = vunpack.c.h.b16 %v933
        %v1275 = vunpack.c.l.b16 %v934
        %v1276 = vunpack.c.h.b16 %v934
        %v1277 = vunpack.c.l.b16 %v935
        %v1278 = vunpack.c.h.b16 %v935
        %v1279 = vunpack.c.l.b16 %v936
        %v1280 = vunpack.c.h.b16 %v936
        %v1281 = vunpack.c.l.b16 %v937
        %v1282 = vunpack.c.h.b16 %v937
        %v1283 = vunpack.c.l.b16 %v938
        %v1284 = vunpack.c.h.b16 %v938
        %v1285 = vunpack.c.l.b16 %v939
        %v1286 = vunpack.c.h.b16 %v939
        %v1287 = vunpack.c.l.b16 %v940
        %v1288 = vunpack.c.h.b16 %v940
        %v1289 = vunpack.c.l.b16 %v941
        %v1290 = vunpack.c.h.b16 %v941
        %v1291 = vunpack.c.l.b16 %v942
        %v1292 = vunpack.c.h.b16 %v942
        %v1293 = vunpack.c.l.b16 %v943
        %v1294 = vunpack.c.h.b16 %v943
        %v1295 = vunpack.c.l.b16 %v944
        %v1296 = vunpack.c.h.b16 %v944
        %v1297 = vunpack.c.l.b16 %v945
        %v1298 = vunpack.c.h.b16 %v945
        %v1299 = vunpack.c.l.b16 %v946
        %v1300 = vunpack.c.h.b16 %v946
        %v1301 = vunpack.c.l.b16 %v947
        %v1302 = vunpack.c.h.b16 %v947
        %v1303 = vunpack.c.l.b16 %v948
        %v1304 = vunpack.c.h.b16 %v948
        %v1305 = vunpack.c.l.b16 %v949
        %v1306 = vunpack.c.h.b16 %v949
        %v1307 = vunpack.c.l.b16 %v950
        %v1308 = vunpack.c.h.b16 %v950
        %v1309 = vunpack.c.l.b16 %v951
        %v1310 = vunpack.c.h.b16 %v951
        %v1311 = vunpack.c.l.b16 %v952
        %v1312 = vunpack.c.h.b16 %v952
        %v1313 = vunpack.c.l.b16 %v953
        %v1314 = vunpack.c.h.b16 %v953
        %v1315 = vunpack.c.l.b16 %v954
        %v1316 = vunpack.c.h.b16 %v954
        %v1317 = vunpack.c.l.b16 %v955
        %v1318 = vunpack.c.h.b16 %v955
        %v1319 = vunpack.c.l.b16 %v956
        %v1320 = vunpack.c.h.b16 %v956
        %v1321 = vunpack.c.l.b16 %v957
        %v1322 = vunpack.c.h.b16 %v957
        %v1323 = vunpack.c.l.b16 %v958
        %v1324 = vunpack.c.h.b16 %v958
        %v1325 = vunpack.c.l.b16 %v959
        %v1326 = vunpack.c.h.b16 %v959
        %v1327 = vunpack.c.l.b16 %v960
        %v1328 = vunpack.c.h.b16 %v960
        %v1329 = vunpack.c.l.b16 %v961
        %v1330 = vunpack.c.h.b16 %v961
        %v1331 = vunpack.c.l.b16 %v962
        %v1332 = vunpack.c.h.b16 %v962
        %v1333 = vunpack.c.l.b16 %v963
        %v1334 = vunpack.c.h.b16 %v963
        %v1335 = vunpack.c.l.b16 %v964
        %v1336 = vunpack.c.h.b16 %v964
        %v1337 = vunpack.c.l.b16 %v965
        %v1338 = vunpack.c.h.b16 %v965
        %v1339 = vunpack.c.l.b16 %v966
        %v1340 = vunpack.c.h.b16 %v966
        %v1341 = vunpack.c.l.b16 %v967
        %v1342 = vunpack.c.h.b16 %v967
        %v1343 = vunpack.c.l.b16 %v968
        %v1344 = vunpack.c.h.b16 %v968
        %v1345 = vunpack.c.l.b16 %v969
        %v1346 = vunpack.c.h.b16 %v969
        %v1347 = vunpack.c.l.b16 %v970
        %v1348 = vunpack.c.h.b16 %v970
        %v1349 = vunpack.c.l.b16 %v971
        %v1350 = vunpack.c.h.b16 %v971
        %v1351 = vunpack.c.l.b16 %v972
        %v1352 = vunpack.c.h.b16 %v972
        %v1353 = vunpack.c.l.b16 %v973
        %v1354 = vunpack.c.h.b16 %v973
        %v1355 = vunpack.c.l.b16 %v974
        %v1356 = vunpack.c.h.b16 %v974
        %v1357 = vunpack.c.l.b16 %v975
        %v1358 = vunpack.c.h.b16 %v975
        %v1359 = vunpack.c.l.b16 %v976
        %v1360 = vunpack.c.h.b16 %v976
        %v1361 = vunpack.c.l.b16 %v977
        %v1362 = vunpack.c.h.b16 %v977
        %v1363 = vunpack.c.l.b16 %v978
        %v1364 = vunpack.c.h.b16 %v978
        %v1365 = vunpack.c.l.b16 %v979
        %v1366 = vunpack.c.h.b16 %v979
        %v1367 = vunpack.c.l.b16 %v980
        %v1368 = vunpack.c.h.b16 %v980
        %v1369 = vunpack.c.l.b16 %v981
        %v1370 = vunpack.c.h.b16 %v981
        %v1371 = vunpack.c.l.b16 %v982
        %v1372 = vunpack.c.h.b16 %v982
        %v1373 = vunpack.c.l.b16 %v983
        %v1374 = vunpack.c.h.b16 %v983
        %v1375 = vunpack.c.l.b16 %v984
        %v1376 = vunpack.c.h.b16 %v984
        %v1377 = vunpack.c.l.b16 %v985
        %v1378 = vunpack.c.h.b16 %v985
        %v1379 = vunpack.c.l.b16 %v986
        %v1380 = vunpack.c.h.b16 %v986
        %v1381 = vunpack.c.l.b16 %v987
        %v1382 = vunpack.c.h.b16 %v987
        %v1383 = vunpack.c.l.b16 %v988
        %v1384 = vunpack.c.h.b16 %v988
        %v1385 = vunpack.c.l.b16 %v989
        %v1386 = vunpack.c.h.b16 %v989
        %v1387 = vunpack.c.l.b16 %v990
        %v1388 = vunpack.c.h.b16 %v990
        %v1389 = vunpack.c.l.b16 %v991
        %v1390 = vunpack.c.h.b16 %v991
        %v1391 = vunpack.c.l.b16 %v992
        %v1392 = vunpack.c.h.b16 %v992
        %v1393 = vunpack.c.l.b16 %v993
        %v1394 = vunpack.c.h.b16 %v993
        %v1395 = vunpack.c.l.b16 %v994
        %v1396 = vunpack.c.h.b16 %v994
        %v1397 = vunpack.c.l.b16 %v995
        %v1398 = vunpack.c.h.b16 %v995
        %v1399 = vunpack.c.l.b16 %v996
        %v1400 = vunpack.c.h.b16 %v996
        %v1401 = vunpack.c.l.b16 %v997
        %v1402 = vunpack.c.h.b16 %v997
        %v1403 = vunpack.c.l.b16 %v998
        %v1404 = vunpack.c.h.b16 %v998
        %v1405 = vpack.c.b16 %v1153, %v1149
        %v1406 = vpack.c.b16 %v1154, %v1150
        %v1407 = vpack.c.b16 %v1155, %v1151
        %v1408 = vpack.c.b16 %v1156, %v1152
        %v1409 = vpack.c.b16 %v1161, %v1157
        %v1410 = vpack.c.b16 %v1162, %v1158
        %v1411 = vpack.c.b16 %v1163, %v1159
        %v1412 = vpack.c.b16 %v1164, %v1160
        %v1413 = vpack.c.b16 %v1169, %v1165
        %v1414 = vpack.c.b16 %v1170, %v1166
        %v1415 = vpack.c.b16 %v1171, %v1167
        %v1416 = vpack.c.b16 %v1172, %v1168
        %v1417 = vpack.c.b16 %v1177, %v1173
        %v1418 = vpack.c.b16 %v1178, %v1174
        %v1419 = vpack.c.b16 %v1179, %v1175
        %v1420 = vpack.c.b16 %v1180, %v1176
        %v1421 = vpack.c.b16 %v1185, %v1181
        %v1422 = vpack.c.b16 %v1186, %v1182
        %v1423 = vpack.c.b16 %v1187, %v1183
        %v1424 = vpack.c.b16 %v1188, %v1184
        %v1425 = vpack.c.b16 %v1193, %v1189
        %v1426 = vpack.c.b16 %v1194, %v1190
        %v1427 = vpack.c.b16 %v1195, %v1191
        %v1428 = vpack.c.b16 %v1196, %v1192
        %v1429 = vpack.c.b16 %v1201, %v1197
        %v1430 = vpack.c.b16 %v1202, %v1198
        %v1431 = vpack.c.b16 %v1203, %v1199
        %v1432 = vpack.c.b16 %v1204, %v1200
        %v1433 = vpack.c.b16 %v1209, %v1205
        %v1434 = vpack.c.b16 %v1210, %v1206
        %v1435 = vpack.c.b16 %v1211, %v1207
        %v1436 = vpack.c.b16 %v1212, %v1208
        %v1437 = vpack.c.b16 %v1217, %v1213
        %v1438 = vpack.c.b16 %v1218, %v1214
        %v1439 = vpack.c.b16 %v1219, %v1215
        %v1440 = vpack.c.b16 %v1220, %v1216
        %v1441 = vpack.c.b16 %v1225, %v1221
        %v1442 = vpack.c.b16 %v1226, %v1222
        %v1443 = vpack.c.b16 %v1227, %v1223
        %v1444 = vpack.c.b16 %v1228, %v1224
        %v1445 = vpack.c.b16 %v1233, %v1229
        %v1446 = vpack.c.b16 %v1234, %v1230
        %v1447 = vpack.c.b16 %v1235, %v1231
        %v1448 = vpack.c.b16 %v1236, %v1232
        %v1449 = vpack.c.b16 %v1241, %v1237
        %v1450 = vpack.c.b16 %v1242, %v1238
        %v1451 = vpack.c.b16 %v1243, %v1239
        %v1452 = vpack.c.b16 %v1244, %v1240
        %v1453 = vpack.c.b16 %v1249, %v1245
        %v1454 = vpack.c.b16 %v1250, %v1246
        %v1455 = vpack.c.b16 %v1251, %v1247
        %v1456 = vpack.c.b16 %v1252, %v1248
        %v1457 = vpack.c.b16 %v1257, %v1253
        %v1458 = vpack.c.b16 %v1258, %v1254
        %v1459 = vpack.c.b16 %v1259, %v1255
        %v1460 = vpack.c.b16 %v1260, %v1256
        %v1461 = vpack.c.b16 %v1265, %v1261
        %v1462 = vpack.c.b16 %v1266, %v1262
        %v1463 = vpack.c.b16 %v1267, %v1263
        %v1464 = vpack.c.b16 %v1268, %v1264
        %v1465 = vpack.c.b16 %v1273, %v1269
        %v1466 = vpack.c.b16 %v1274, %v1270
        %v1467 = vpack.c.b16 %v1275, %v1271
        %v1468 = vpack.c.b16 %v1276, %v1272
        %v1469 = vpack.c.b16 %v1281, %v1277
        %v1470 = vpack.c.b16 %v1282, %v1278
        %v1471 = vpack.c.b16 %v1283, %v1279
        %v1472 = vpack.c.b16 %v1284, %v1280
        %v1473 = vpack.c.b16 %v1289, %v1285
        %v1474 = vpack.c.b16 %v1290, %v1286
        %v1475 = vpack.c.b16 %v1291, %v1287
        %v1476 = vpack.c.b16 %v1292, %v1288
        %v1477 = vpack.c.b16 %v1297, %v1293
        %v1478 = vpack.c.b16 %v1298, %v1294
        %v1479 = vpack.c.b16 %v1299, %v1295
        %v1480 = vpack.c.b16 %v1300, %v1296
        %v1481 = vpack.c.b16 %v1305, %v1301
        %v1482 = vpack.c.b16 %v1306, %v1302
        %v1483 = vpack.c.b16 %v1307, %v1303
        %v1484 = vpack.c.b16 %v1308, %v1304
        %v1485 = vpack.c.b16 %v1313, %v1309
        %v1486 = vpack.c.b16 %v1314, %v1310
        %v1487 = vpack.c.b16 %v1315, %v1311
        %v1488 = vpack.c.b16 %v1316, %v1312
        %v1489 = vpack.c.b16 %v1321, %v1317
        %v1490 = vpack.c.b16 %v1322, %v1318
        %v1491 = vpack.c.b16 %v1323, %v1319
        %v1492 = vpack.c.b16 %v1324, %v1320
        %v1493 = vpack.c.b16 %v1329, %v1325
        %v1494 = vpack.c.b16 %v1330, %v1326
        %v1495 = vpack.c.b16 %v1331, %v1327
        %v1496 = vpack.c.b16 %v1332, %v1328
        %v1497 = vpack.c.b16 %v1337, %v1333
        %v1498 = vpack.c.b16 %v1338, %v1334
        %v1499 = vpack.c.b16 %v1339, %v1335
        %v1500 = vpack.c.b16 %v1340, %v1336
        %v1501 = vpack.c.b16 %v1345, %v1341
        %v1502 = vpack.c.b16 %v1346, %v1342
        %v1503 = vpack.c.b16 %v1347, %v1343
        %v1504 = vpack.c.b16 %v1348, %v1344
        %v1505 = vpack.c.b16 %v1353, %v1349
        %v1506 = vpack.c.b16 %v1354, %v1350
        %v1507 = vpack.c.b16 %v1355, %v1351
        %v1508 = vpack.c.b16 %v1356, %v1352
        %v1509 = vpack.c.b16 %v1361, %v1357
        %v1510 = vpack.c.b16 %v1362, %v1358
        %v1511 = vpack.c.b16 %v1363, %v1359
        %v1512 = vpack.c.b16 %v1364, %v1360
        %v1513 = vpack.c.b16 %v1369, %v1365
        %v1514 = vpack.c.b16 %v1370, %v1366
        %v1515 = vpack.c.b16 %v1371, %v1367
        %v1516 = vpack.c.b16 %v1372, %v1368
        %v1517 = vpack.c.b16 %v1377, %v1373
        %v1518 = vpack.c.b16 %v1378, %v1374
        %v1519 = vpack.c.b16 %v1379, %v1375
        %v1520 = vpack.c.b16 %v1380, %v1376
        %v1521 = vpack.c.b16 %v1385, %v1381
        %v1522 = vpack.c.b16 %v1386, %v1382
        %v1523 = vpack.c.b16 %v1387, %v1383
        %v1524 = vpack.c.b16 %v1388, %v1384
        %v1525 = vpack.c.b16 %v1393, %v1389
        %v1526 = vpack.c.b16 %v1394, %v1390
        %v1527 = vpack.c.b16 %v1395, %v1391
        %v1528 = vpack.c.b16 %v1396, %v1392
        %v1529 = vpack.c.b16 %v1401, %v1397
        %v1530 = vpack.c.b16 %v1402, %v1398
        %v1531 = vpack.c.b16 %v1403, %v1399
        %v1532 = vpack.c.b16 %v1404, %v1400
        %1661 = vmatprep.subr.bf16.mxu0 %v1406
        %1662 = vmatpush1.bf16.msra.mxu0 %v1405
        %1663 = vmatprep.subr.bf16.mxu0 %v1410
        %1664 = vmatpush1.bf16.msra.mxu0 %v1409
        %1665 = vmatprep.subr.bf16.mxu0 %v1414
        %1666 = vmatpush1.bf16.msra.mxu0 %v1413
        %1667 = vmatprep.subr.bf16.mxu0 %v1418
        %1668 = vmatpush1.bf16.msra.mxu0 %v1417
        %1669 = vmatprep.subr.bf16.mxu0 %v1422
        %1670 = vmatpush1.bf16.msra.mxu0 %v1421
        %1671 = vmatprep.subr.bf16.mxu0 %v1426
        %1672 = vmatpush1.bf16.msra.mxu0 %v1425
        %1673 = vmatprep.subr.bf16.mxu0 %v1430
        %1674 = vmatpush1.bf16.msra.mxu0 %v1429
        %1675 = vmatprep.subr.bf16.mxu0 %v1434
        %1676 = vmatpush1.bf16.msra.mxu0 %v1433
        %1677 = vmatprep.subr.bf16.mxu0 %v1438
        %1678 = vmatpush1.bf16.msra.mxu0 %v1437
        %1679 = vmatprep.subr.bf16.mxu0 %v1442
        %1680 = vmatpush1.bf16.msra.mxu0 %v1441
        %1681 = vmatprep.subr.bf16.mxu0 %v1446
        %1682 = vmatpush1.bf16.msra.mxu0 %v1445
        %1683 = vmatprep.subr.bf16.mxu0 %v1450
        %1684 = vmatpush1.bf16.msra.mxu0 %v1449
        %1685 = vmatprep.subr.bf16.mxu0 %v1454
        %1686 = vmatpush1.bf16.msra.mxu0 %v1453
        %1687 = vmatprep.subr.bf16.mxu0 %v1458
        %1688 = vmatpush1.bf16.msra.mxu0 %v1457
        %1689 = vmatprep.subr.bf16.mxu0 %v1462
        %1690 = vmatpush1.bf16.msra.mxu0 %v1461
        %1691 = vmatprep.subr.bf16.mxu0 %v1466
        %1692 = vmatpush1.bf16.msra.mxu0 %v1465
        %1693 = vmatprep.mubr.bf16.mxu0 %v868
        %1694 = vmatmul.mubr.bf16.gmra.mrb[0].mxu0 %v867
        %v1695 = vpop.f32.mrb[0].mxu0
        %v1696 = vadd.f32 %v1004, %v1695
        %v1697 = vpop.f32.mrb[0].mxu0
        %v1698 = vadd.f32 %v1008, %v1697
        %v1699 = vpop.f32.mrb[0].mxu0
        %v1700 = vadd.f32 %v1004, %v1699
        %v1701 = vpop.f32.mrb[0].mxu0
        %v1702 = vadd.f32 %v1008, %v1701
        %1703 = vdwg.mxu0
        %1704 = vmatprep.subr.bf16.mxu0 %v1470
        %1705 = vmatpush1.bf16.msra.mxu0 %v1469
        %1706 = vmatprep.subr.bf16.mxu0 %v1474
        %1707 = vmatpush1.bf16.msra.mxu0 %v1473
        %1708 = vmatprep.subr.bf16.mxu0 %v1478
        %1709 = vmatpush1.bf16.msra.mxu0 %v1477
        %1710 = vmatprep.subr.bf16.mxu0 %v1482
        %1711 = vmatpush1.bf16.msra.mxu0 %v1481
        %1712 = vmatprep.subr.bf16.mxu0 %v1486
        %1713 = vmatpush1.bf16.msra.mxu0 %v1485
        %1714 = vmatprep.subr.bf16.mxu0 %v1490
        %1715 = vmatpush1.bf16.msra.mxu0 %v1489
        %1716 = vmatprep.subr.bf16.mxu0 %v1494
        %1717 = vmatpush1.bf16.msra.mxu0 %v1493
        %1718 = vmatprep.subr.bf16.mxu0 %v1498
        %1719 = vmatpush1.bf16.msra.mxu0 %v1497
        %1720 = vmatprep.subr.bf16.mxu0 %v1502
        %1721 = vmatpush1.bf16.msra.mxu0 %v1501
        %1722 = vmatprep.subr.bf16.mxu0 %v1506
        %1723 = vmatpush1.bf16.msra.mxu0 %v1505
        %1724 = vmatprep.subr.bf16.mxu0 %v1510
        %1725 = vmatpush1.bf16.msra.mxu0 %v1509
        %1726 = vmatprep.subr.bf16.mxu0 %v1514
        %1727 = vmatpush1.bf16.msra.mxu0 %v1513
        %1728 = vmatprep.subr.bf16.mxu0 %v1518
        %1729 = vmatpush1.bf16.msra.mxu0 %v1517
        %1730 = vmatprep.subr.bf16.mxu0 %v1522
        %1731 = vmatpush1.bf16.msra.mxu0 %v1521
        %1732 = vmatprep.subr.bf16.mxu0 %v1526
        %1733 = vmatpush1.bf16.msra.mxu0 %v1525
        %1734 = vmatprep.subr.bf16.mxu0 %v1530
        %1735 = vmatpush1.bf16.msra.mxu0 %v1529
        %1736 = vmatprep.mubr.bf16.mxu0 %v870
        %1737 = vmatmul.mubr.bf16.gmra.mrb[0].mxu0 %v869
        %v1738 = vpop.f32.mrb[0].mxu0
        %v1739 = vadd.f32 %v1696, %v1738
        %v1740 = vpop.f32.mrb[0].mxu0
        %v1741 = vadd.f32 %v1698, %v1740
        %v1742 = vpop.f32.mrb[0].mxu0
        %v1743 = vadd.f32 %v1700, %v1742
        %v1744 = vpop.f32.mrb[0].mxu0
        %v1745 = vadd.f32 %v1702, %v1744
        %1746 = vdwg.mxu0
        %1747 = vmatprep.subr.bf16.mxu0 %v1408
        %1748 = vmatpush1.bf16.msra.mxu0 %v1407
        %1749 = vmatprep.subr.bf16.mxu0 %v1412
        %1750 = vmatpush1.bf16.msra.mxu0 %v1411
        %1751 = vmatprep.subr.bf16.mxu0 %v1416
        %1752 = vmatpush1.bf16.msra.mxu0 %v1415
        %1753 = vmatprep.subr.bf16.mxu0 %v1420
        %1754 = vmatpush1.bf16.msra.mxu0 %v1419
        %1755 = vmatprep.subr.bf16.mxu0 %v1424
        %1756 = vmatpush1.bf16.msra.mxu0 %v1423
        %1757 = vmatprep.subr.bf16.mxu0 %v1428
        %1758 = vmatpush1.bf16.msra.mxu0 %v1427
        %1759 = vmatprep.subr.bf16.mxu0 %v1432
        %1760 = vmatpush1.bf16.msra.mxu0 %v1431
        %1761 = vmatprep.subr.bf16.mxu0 %v1436
        %1762 = vmatpush1.bf16.msra.mxu0 %v1435
        %1763 = vmatprep.subr.bf16.mxu0 %v1440
        %1764 = vmatpush1.bf16.msra.mxu0 %v1439
        %1765 = vmatprep.subr.bf16.mxu0 %v1444
        %1766 = vmatpush1.bf16.msra.mxu0 %v1443
        %1767 = vmatprep.subr.bf16.mxu0 %v1448
        %1768 = vmatpush1.bf16.msra.mxu0 %v1447
        %1769 = vmatprep.subr.bf16.mxu0 %v1452
        %1770 = vmatpush1.bf16.msra.mxu0 %v1451
        %1771 = vmatprep.subr.bf16.mxu0 %v1456
        %1772 = vmatpush1.bf16.msra.mxu0 %v1455
        %1773 = vmatprep.subr.bf16.mxu0 %v1460
        %1774 = vmatpush1.bf16.msra.mxu0 %v1459
        %1775 = vmatprep.subr.bf16.mxu0 %v1464
        %1776 = vmatpush1.bf16.msra.mxu0 %v1463
        %1777 = vmatprep.subr.bf16.mxu0 %v1468
        %1778 = vmatpush1.bf16.msra.mxu0 %v1467
        %1779 = vmatprep.mubr.bf16.mxu0 %v868
        %1780 = vmatmul.mubr.bf16.gmra.mrb[0].mxu0 %v867
        %v1781 = vpop.f32.mrb[0].mxu0
        %v1782 = vadd.f32 %v1012, %v1781
        %v1783 = vpop.f32.mrb[0].mxu0
        %v1784 = vadd.f32 %v1016, %v1783
        %v1785 = vpop.f32.mrb[0].mxu0
        %v1786 = vadd.f32 %v1012, %v1785
        %v1787 = vpop.f32.mrb[0].mxu0
        %v1788 = vadd.f32 %v1016, %v1787
        %1789 = vdwg.mxu0
        %1790 = vmatprep.subr.bf16.mxu0 %v1472
        %1791 = vmatpush1.bf16.msra.mxu0 %v1471
        %1792 = vmatprep.subr.bf16.mxu0 %v1476
        %1793 = vmatpush1.bf16.msra.mxu0 %v1475
        %1794 = vmatprep.subr.bf16.mxu0 %v1480
        %1795 = vmatpush1.bf16.msra.mxu0 %v1479
        %1796 = vmatprep.subr.bf16.mxu0 %v1484
        %1797 = vmatpush1.bf16.msra.mxu0 %v1483
        %1798 = vmatprep.subr.bf16.mxu0 %v1488
        %1799 = vmatpush1.bf16.msra.mxu0 %v1487
        %1800 = vmatprep.subr.bf16.mxu0 %v1492
        %1801 = vmatpush1.bf16.msra.mxu0 %v1491
        %1802 = vmatprep.subr.bf16.mxu0 %v1496
        %1803 = vmatpush1.bf16.msra.mxu0 %v1495
        %1804 = vmatprep.subr.bf16.mxu0 %v1500
        %1805 = vmatpush1.bf16.msra.mxu0 %v1499
        %1806 = vmatprep.subr.bf16.mxu0 %v1504
        %1807 = vmatpush1.bf16.msra.mxu0 %v1503
        %1808 = vmatprep.subr.bf16.mxu0 %v1508
        %1809 = vmatpush1.bf16.msra.mxu0 %v1507
        %1810 = vmatprep.subr.bf16.mxu0 %v1512
        %1811 = vmatpush1.bf16.msra.mxu0 %v1511
        %1812 = vmatprep.subr.bf16.mxu0 %v1516
        %1813 = vmatpush1.bf16.msra.mxu0 %v1515
        %1814 = vmatprep.subr.bf16.mxu0 %v1520
        %1815 = vmatpush1.bf16.msra.mxu0 %v1519
        %1816 = vmatprep.subr.bf16.mxu0 %v1524
        %1817 = vmatpush1.bf16.msra.mxu0 %v1523
        %1818 = vmatprep.subr.bf16.mxu0 %v1528
        %1819 = vmatpush1.bf16.msra.mxu0 %v1527
        %1820 = vmatprep.subr.bf16.mxu0 %v1532
        %1821 = vmatpush1.bf16.msra.mxu0 %v1531
        %1822 = vmatprep.mubr.bf16.mxu0 %v870
        %1823 = vmatmul.mubr.bf16.gmra.mrb[0].mxu0 %v869
        %v1824 = vpop.f32.mrb[0].mxu0
        %v1825 = vadd.f32 %v1782, %v1824
        %v1826 = vpop.f32.mrb[0].mxu0
        %v1827 = vadd.f32 %v1784, %v1826
        %v1828 = vpop.f32.mrb[0].mxu0
        %v1829 = vadd.f32 %v1786, %v1828
        %v1830 = vpop.f32.mrb[0].mxu0
        %v1831 = vadd.f32 %v1788, %v1830
        %1832 = vdwg.mxu0
        %vm1833 = vcmp.ge.f32.partialorder %v1739, 0.0
        %vm1834 = vcmp.ge.f32.partialorder %v1741, 0.0
        %vm1835 = vcmp.ge.f32.partialorder %v1825, 0.0
        %vm1836 = vcmp.ge.f32.partialorder %v1827, 0.0
        %vm1837 = vcmp.ge.f32.partialorder %v1743, 0.0
        %vm1838 = vcmp.ge.f32.partialorder %v1745, 0.0
        %vm1839 = vcmp.ge.f32.partialorder %v1829, 0.0
        %vm1840 = vcmp.ge.f32.partialorder %v1831, 0.0
        %v1841 = vmul.f32 %v1739, 0.01
        %v1842 = vmul.f32 %v1741, 0.01
        %v1843 = vmul.f32 %v1825, 0.01
        %v1844 = vmul.f32 %v1827, 0.01
        %v1845 = vmul.f32 %v1743, 0.01
        %v1846 = vmul.f32 %v1745, 0.01
        %v1847 = vmul.f32 %v1829, 0.01
        %v1848 = vmul.f32 %v1831, 0.01
        %v1849 = vsel %vm1833, %v1739, %v1841
        %v1850 = vsel %vm1834, %v1741, %v1842
        %v1851 = vsel %vm1835, %v1825, %v1843
        %v1852 = vsel %vm1836, %v1827, %v1844
        %v1853 = vsel %vm1837, %v1743, %v1845
        %v1854 = vsel %vm1838, %v1745, %v1846
        %v1855 = vsel %vm1839, %v1829, %v1847
        %v1856 = vsel %vm1840, %v1831, %v1848
        %v1857 = vpack.c.bf16 %v1853, %v1849
        %v1858 = vpack.c.bf16 %v1854, %v1850
        %v1859 = vpack.c.bf16 %v1855, %v1851
        %v1860 = vpack.c.bf16 %v1856, %v1852
        %v1861 = vld [vmem:[#allocation8] sm:$0xf]
        %v1862 = vld [vmem:[#allocation8 + $0x4] sm:$0xf]
        %v1863 = vld [vmem:[#allocation8 + $0x8] sm:$0xf]
        %v1864 = vld [vmem:[#allocation8 + $0xc] sm:$0xf]
        %v1865 = vld [vmem:[#allocation8 + $0x10] sm:$0xf]
        %v1866 = vld [vmem:[#allocation8 + $0x14] sm:$0xf]
        %v1867 = vld [vmem:[#allocation8 + $0x18] sm:$0xf]
        %v1868 = vld [vmem:[#allocation8 + $0x1c] sm:$0xf]
        %v1869 = vld [vmem:[#allocation8 + $0x20] sm:$0xf]
        %v1870 = vld [vmem:[#allocation8 + $0x24] sm:$0xf]
        %v1871 = vld [vmem:[#allocation8 + $0x28] sm:$0xf]
        %v1872 = vld [vmem:[#allocation8 + $0x2c] sm:$0xf]
        %v1873 = vld [vmem:[#allocation8 + $0x30] sm:$0xf]
        %v1874 = vld [vmem:[#allocation8 + $0x34] sm:$0xf]
        %v1875 = vld [vmem:[#allocation8 + $0x38] sm:$0xf]
        %v1876 = vld [vmem:[#allocation8 + $0x3c] sm:$0xf]
        %v1877 = vld [vmem:[#allocation8 + $0x40] sm:$0xf]
        %v1878 = vld [vmem:[#allocation8 + $0x44] sm:$0xf]
        %v1879 = vld [vmem:[#allocation8 + $0x48] sm:$0xf]
        %v1880 = vld [vmem:[#allocation8 + $0x4c] sm:$0xf]
        %v1881 = vld [vmem:[#allocation8 + $0x50] sm:$0xf]
        %v1882 = vld [vmem:[#allocation8 + $0x54] sm:$0xf]
        %v1883 = vld [vmem:[#allocation8 + $0x58] sm:$0xf]
        %v1884 = vld [vmem:[#allocation8 + $0x5c] sm:$0xf]
        %v1885 = vld [vmem:[#allocation8 + $0x60] sm:$0xf]
        %v1886 = vld [vmem:[#allocation8 + $0x64] sm:$0xf]
        %v1887 = vld [vmem:[#allocation8 + $0x68] sm:$0xf]
        %v1888 = vld [vmem:[#allocation8 + $0x6c] sm:$0xf]
        %v1889 = vld [vmem:[#allocation8 + $0x70] sm:$0xf]
        %v1890 = vld [vmem:[#allocation8 + $0x74] sm:$0xf]
        %v1891 = vld [vmem:[#allocation8 + $0x78] sm:$0xf]
        %v1892 = vld [vmem:[#allocation8 + $0x7c] sm:$0xf]
        %v1893 = vld [vmem:[#allocation8 + $0x80] sm:$0xf]
        %v1894 = vld [vmem:[#allocation8 + $0x84] sm:$0xf]
        %v1895 = vld [vmem:[#allocation8 + $0x88] sm:$0xf]
        %v1896 = vld [vmem:[#allocation8 + $0x8c] sm:$0xf]
        %v1897 = vld [vmem:[#allocation8 + $0x90] sm:$0xf]
        %v1898 = vld [vmem:[#allocation8 + $0x94] sm:$0xf]
        %v1899 = vld [vmem:[#allocation8 + $0x98] sm:$0xf]
        %v1900 = vld [vmem:[#allocation8 + $0x9c] sm:$0xf]
        %v1901 = vld [vmem:[#allocation8 + $0xa0] sm:$0xf]
        %v1902 = vld [vmem:[#allocation8 + $0xa4] sm:$0xf]
        %v1903 = vld [vmem:[#allocation8 + $0xa8] sm:$0xf]
        %v1904 = vld [vmem:[#allocation8 + $0xac] sm:$0xf]
        %v1905 = vld [vmem:[#allocation8 + $0xb0] sm:$0xf]
        %v1906 = vld [vmem:[#allocation8 + $0xb4] sm:$0xf]
        %v1907 = vld [vmem:[#allocation8 + $0xb8] sm:$0xf]
        %v1908 = vld [vmem:[#allocation8 + $0xbc] sm:$0xf]
        %v1909 = vld [vmem:[#allocation8 + $0xc0] sm:$0xf]
        %v1910 = vld [vmem:[#allocation8 + $0xc4] sm:$0xf]
        %v1911 = vld [vmem:[#allocation8 + $0xc8] sm:$0xf]
        %v1912 = vld [vmem:[#allocation8 + $0xcc] sm:$0xf]
        %v1913 = vld [vmem:[#allocation8 + $0xd0] sm:$0xf]
        %v1914 = vld [vmem:[#allocation8 + $0xd4] sm:$0xf]
        %v1915 = vld [vmem:[#allocation8 + $0xd8] sm:$0xf]
        %v1916 = vld [vmem:[#allocation8 + $0xdc] sm:$0xf]
        %v1917 = vld [vmem:[#allocation8 + $0xe0] sm:$0xf]
        %v1918 = vld [vmem:[#allocation8 + $0xe4] sm:$0xf]
        %v1919 = vld [vmem:[#allocation8 + $0xe8] sm:$0xf]
        %v1920 = vld [vmem:[#allocation8 + $0xec] sm:$0xf]
        %v1921 = vld [vmem:[#allocation8 + $0xf0] sm:$0xf]
        %v1922 = vld [vmem:[#allocation8 + $0xf4] sm:$0xf]
        %v1923 = vld [vmem:[#allocation8 + $0xf8] sm:$0xf]
        %v1924 = vld [vmem:[#allocation8 + $0xfc] sm:$0xf]
        %v1925 = vld [vmem:[%s6] sm:$0x1]
        %v1927 = vlaneseq
        %v1928 = vshrl.u32 %v1927, 7
        %v1929 = vsub.s32 0, %v1928
        %v1930 = vrot.slane %v1925, %v1929
        %v1996 = vunpack.c.l.b16 %v1861
        %v1997 = vunpack.c.l.b16 %v1862
        %v1998 = vunpack.c.l.b16 %v1863
        %v1999 = vunpack.c.l.b16 %v1864
        %v2000 = vunpack.c.l.b16 %v1865
        %v2001 = vunpack.c.l.b16 %v1866
        %v2002 = vunpack.c.l.b16 %v1867
        %v2003 = vunpack.c.l.b16 %v1868
        %v2004 = vunpack.c.l.b16 %v1869
        %v2005 = vunpack.c.l.b16 %v1870
        %v2006 = vunpack.c.l.b16 %v1871
        %v2007 = vunpack.c.l.b16 %v1872
        %v2008 = vunpack.c.l.b16 %v1873
        %v2009 = vunpack.c.l.b16 %v1874
        %v2010 = vunpack.c.l.b16 %v1875
        %v2011 = vunpack.c.l.b16 %v1876
        %v2012 = vunpack.c.l.b16 %v1877
        %v2013 = vunpack.c.l.b16 %v1878
        %v2014 = vunpack.c.l.b16 %v1879
        %v2015 = vunpack.c.l.b16 %v1880
        %v2016 = vunpack.c.l.b16 %v1881
        %v2017 = vunpack.c.l.b16 %v1882
        %v2018 = vunpack.c.l.b16 %v1883
        %v2019 = vunpack.c.l.b16 %v1884
        %v2020 = vunpack.c.l.b16 %v1885
        %v2021 = vunpack.c.l.b16 %v1886
        %v2022 = vunpack.c.l.b16 %v1887
        %v2023 = vunpack.c.l.b16 %v1888
        %v2024 = vunpack.c.l.b16 %v1889
        %v2025 = vunpack.c.l.b16 %v1890
        %v2026 = vunpack.c.l.b16 %v1891
        %v2027 = vunpack.c.l.b16 %v1892
        %v2028 = vunpack.c.l.b16 %v1893
        %v2029 = vunpack.c.l.b16 %v1894
        %v2030 = vunpack.c.l.b16 %v1895
        %v2031 = vunpack.c.l.b16 %v1896
        %v2032 = vunpack.c.l.b16 %v1897
        %v2033 = vunpack.c.l.b16 %v1898
        %v2034 = vunpack.c.l.b16 %v1899
        %v2035 = vunpack.c.l.b16 %v1900
        %v2036 = vunpack.c.l.b16 %v1901
        %v2037 = vunpack.c.l.b16 %v1902
        %v2038 = vunpack.c.l.b16 %v1903
        %v2039 = vunpack.c.l.b16 %v1904
        %v2040 = vunpack.c.l.b16 %v1905
        %v2041 = vunpack.c.l.b16 %v1906
        %v2042 = vunpack.c.l.b16 %v1907
        %v2043 = vunpack.c.l.b16 %v1908
        %v2044 = vunpack.c.l.b16 %v1909
        %v2045 = vunpack.c.l.b16 %v1910
        %v2046 = vunpack.c.l.b16 %v1911
        %v2047 = vunpack.c.l.b16 %v1912
        %v2048 = vunpack.c.l.b16 %v1913
        %v2049 = vunpack.c.l.b16 %v1914
        %v2050 = vunpack.c.l.b16 %v1915
        %v2051 = vunpack.c.l.b16 %v1916
        %v2052 = vunpack.c.l.b16 %v1917
        %v2053 = vunpack.c.l.b16 %v1918
        %v2054 = vunpack.c.l.b16 %v1919
        %v2055 = vunpack.c.l.b16 %v1920
        %v2056 = vunpack.c.l.b16 %v1921
        %v2057 = vunpack.c.l.b16 %v1922
        %v2058 = vunpack.c.l.b16 %v1923
        %v2059 = vunpack.c.l.b16 %v1924
        %v2060 = vpack.c.b16 %v1997, %v1996
        %v2061 = vpack.c.b16 %v1999, %v1998
        %v2062 = vpack.c.b16 %v2001, %v2000
        %v2063 = vpack.c.b16 %v2003, %v2002
        %v2064 = vpack.c.b16 %v2005, %v2004
        %v2065 = vpack.c.b16 %v2007, %v2006
        %v2066 = vpack.c.b16 %v2009, %v2008
        %v2067 = vpack.c.b16 %v2011, %v2010
        %v2068 = vpack.c.b16 %v2013, %v2012
        %v2069 = vpack.c.b16 %v2015, %v2014
        %v2070 = vpack.c.b16 %v2017, %v2016
        %v2071 = vpack.c.b16 %v2019, %v2018
        %v2072 = vpack.c.b16 %v2021, %v2020
        %v2073 = vpack.c.b16 %v2023, %v2022
        %v2074 = vpack.c.b16 %v2025, %v2024
        %v2075 = vpack.c.b16 %v2027, %v2026
        %v2076 = vpack.c.b16 %v2029, %v2028
        %v2077 = vpack.c.b16 %v2031, %v2030
        %v2078 = vpack.c.b16 %v2033, %v2032
        %v2079 = vpack.c.b16 %v2035, %v2034
        %v2080 = vpack.c.b16 %v2037, %v2036
        %v2081 = vpack.c.b16 %v2039, %v2038
        %v2082 = vpack.c.b16 %v2041, %v2040
        %v2083 = vpack.c.b16 %v2043, %v2042
        %v2084 = vpack.c.b16 %v2045, %v2044
        %v2085 = vpack.c.b16 %v2047, %v2046
        %v2086 = vpack.c.b16 %v2049, %v2048
        %v2087 = vpack.c.b16 %v2051, %v2050
        %v2088 = vpack.c.b16 %v2053, %v2052
        %v2089 = vpack.c.b16 %v2055, %v2054
        %v2090 = vpack.c.b16 %v2057, %v2056
        %v2091 = vpack.c.b16 %v2059, %v2058
        %2124 = vmatprep.subr.bf16.mxu0 0
        %2125 = vmatpush1.bf16.msra.mxu0 %v2060
        %2126 = vmatprep.subr.bf16.mxu0 0
        %2127 = vmatpush1.bf16.msra.mxu0 %v2061
        %2128 = vmatprep.subr.bf16.mxu0 0
        %2129 = vmatpush1.bf16.msra.mxu0 %v2062
        %2130 = vmatprep.subr.bf16.mxu0 0
        %2131 = vmatpush1.bf16.msra.mxu0 %v2063
        %2132 = vmatprep.subr.bf16.mxu0 0
        %2133 = vmatpush1.bf16.msra.mxu0 %v2064
        %2134 = vmatprep.subr.bf16.mxu0 0
        %2135 = vmatpush1.bf16.msra.mxu0 %v2065
        %2136 = vmatprep.subr.bf16.mxu0 0
        %2137 = vmatpush1.bf16.msra.mxu0 %v2066
        %2138 = vmatprep.subr.bf16.mxu0 0
        %2139 = vmatpush1.bf16.msra.mxu0 %v2067
        %2140 = vmatprep.subr.bf16.mxu0 0
        %2141 = vmatpush1.bf16.msra.mxu0 %v2068
        %2142 = vmatprep.subr.bf16.mxu0 0
        %2143 = vmatpush1.bf16.msra.mxu0 %v2069
        %2144 = vmatprep.subr.bf16.mxu0 0
        %2145 = vmatpush1.bf16.msra.mxu0 %v2070
        %2146 = vmatprep.subr.bf16.mxu0 0
        %2147 = vmatpush1.bf16.msra.mxu0 %v2071
        %2148 = vmatprep.subr.bf16.mxu0 0
        %2149 = vmatpush1.bf16.msra.mxu0 %v2072
        %2150 = vmatprep.subr.bf16.mxu0 0
        %2151 = vmatpush1.bf16.msra.mxu0 %v2073
        %2152 = vmatprep.subr.bf16.mxu0 0
        %2153 = vmatpush1.bf16.msra.mxu0 %v2074
        %2154 = vmatprep.subr.bf16.mxu0 0
        %2155 = vmatpush1.bf16.msra.mxu0 %v2075
        %2156 = vmatprep.mubr.bf16.mxu0 %v1858
        %2157 = vmatmul.mubr.bf16.gmra.mrb[0].mxu0 %v1857
        %v2158 = vpop.f32.mrb[0].mxu0
        %v2159 = vadd.f32 %v1930, %v2158
        %v2160 = vpop.f32.mrb[0].mxu0
        %v2161 = vpop.f32.mrb[0].mxu0
        %v2162 = vadd.f32 %v1930, %v2161
        %v2163 = vpop.f32.mrb[0].mxu0
        %2164 = vdwg.mxu0
        %2165 = vmatprep.subr.bf16.mxu0 0
        %2166 = vmatpush1.bf16.msra.mxu0 %v2076
        %2167 = vmatprep.subr.bf16.mxu0 0
        %2168 = vmatpush1.bf16.msra.mxu0 %v2077
        %2169 = vmatprep.subr.bf16.mxu0 0
        %2170 = vmatpush1.bf16.msra.mxu0 %v2078
        %2171 = vmatprep.subr.bf16.mxu0 0
        %2172 = vmatpush1.bf16.msra.mxu0 %v2079
        %2173 = vmatprep.subr.bf16.mxu0 0
        %2174 = vmatpush1.bf16.msra.mxu0 %v2080
        %2175 = vmatprep.subr.bf16.mxu0 0
        %2176 = vmatpush1.bf16.msra.mxu0 %v2081
        %2177 = vmatprep.subr.bf16.mxu0 0
        %2178 = vmatpush1.bf16.msra.mxu0 %v2082
        %2179 = vmatprep.subr.bf16.mxu0 0
        %2180 = vmatpush1.bf16.msra.mxu0 %v2083
        %2181 = vmatprep.subr.bf16.mxu0 0
        %2182 = vmatpush1.bf16.msra.mxu0 %v2084
        %2183 = vmatprep.subr.bf16.mxu0 0
        %2184 = vmatpush1.bf16.msra.mxu0 %v2085
        %2185 = vmatprep.subr.bf16.mxu0 0
        %2186 = vmatpush1.bf16.msra.mxu0 %v2086
        %2187 = vmatprep.subr.bf16.mxu0 0
        %2188 = vmatpush1.bf16.msra.mxu0 %v2087
        %2189 = vmatprep.subr.bf16.mxu0 0
        %2190 = vmatpush1.bf16.msra.mxu0 %v2088
        %2191 = vmatprep.subr.bf16.mxu0 0
        %2192 = vmatpush1.bf16.msra.mxu0 %v2089
        %2193 = vmatprep.subr.bf16.mxu0 0
        %2194 = vmatpush1.bf16.msra.mxu0 %v2090
        %2195 = vmatprep.subr.bf16.mxu0 0
        %2196 = vmatpush1.bf16.msra.mxu0 %v2091
        %2197 = vmatprep.mubr.bf16.mxu0 %v1860
        %2198 = vmatmul.mubr.bf16.gmra.mrb[0].mxu0 %v1859
        %v2199 = vpop.f32.mrb[0].mxu0
        %v2200 = vadd.f32 %v2159, %v2199
        %v2201 = vpop.f32.mrb[0].mxu0
        %v2202 = vpop.f32.mrb[0].mxu0
        %v2203 = vadd.f32 %v2162, %v2202
        %v2204 = vpop.f32.mrb[0].mxu0
        %2205 = vdwg.mxu0
        %v2206 = vmax.f32 %v2200, -1.0
        %v2207 = vmax.f32 %v2203, -1.0
        %v2208 = vmin.f32 %v2206, 1.0
        %v2209 = vmin.f32 %v2207, 1.0
        %2210 = vst [vmem:[%s341] sm:$0xff] %v2208
        %2211 = vst [vmem:[%s341 + $0x8] sm:$0xff] %v2209
        %s2212 = sand.u32 %s186, 1
        %s2213 = scalar_lea.sflag [#allocation4], %s2212
        %s2214 = sand.u32 %s186, 1
        %s2215 = smul.addr %s2214, 16
        %s2216 = scalar_lea.vmem [#allocation10], %s2215
        // Predicated region
        $region65: #{tpu_custom_call.1} parent=47 // pred_check
          %p2217 = pneg %p196
        $region66: #{tpu_custom_call.1} parent=47 // pred_check_branch
          %2219 = sbr.rel (%p2217) target = $region68
        $region67: #{tpu_custom_call.1} parent=47 // pred_region
          %s2220 = smul.u32 2, %s26
          %s2222 = ssub.s32 256, 256
          %2223 = vsyncadd %s2213, %s2222
          %s2224 = smul.addr %s2220, 128
          %s2225 = scalar_lea.hbm %s7, %s2224
          %s2226 = sshll.u32 %s2216, 4
          %s2227 = int_to_ptr.vmem [resolvable:$true] %s2226
          %2232 = dma.vmem_to_hbm [thread:$0]  %s2227, 256, %s2225, %s2213, 128, 128, 8
        $region68: #{tpu_custom_call.1} parent=47 // pred_fallthru
          _
      $region48: #{tpu_custom_call.1} parent=5 // pred_fallthru
        _
      %p2233 = scmp.le.s32.totalorder 2, %s21
      // Predicated region
      $region69: #{tpu_custom_call.1} parent=5 // pred_check
        %p2234 = pneg %p2233
      $region70: #{tpu_custom_call.1} parent=5 // pred_check_branch
        %2236 = sbr.rel (%p2234) target = $region72
      $region71: #{tpu_custom_call.1} parent=5 // pred_region
        %s2237 = ssub.s32 %s21, 2
        // Predicated region
        $region73: #{tpu_custom_call.1} parent=71 // pred_check
          %p2238 = pneg %p202
        $region74: #{tpu_custom_call.1} parent=71 // pred_check_branch
          %2240 = sbr.rel (%p2238) target = $region76
        $region75: #{tpu_custom_call.1} parent=71 // pred_region
          %s2241 = sand.u32 %s187, 1
          %s2242 = scalar_lea.sflag [#allocation4], %s2241
          %s2243 = sand.u32 %s187, 1
          %s2244 = smul.addr %s2243, 16
          %s2245 = scalar_lea.vmem [#allocation10], %s2244
          %2246 = dma.done %s2242, 256
        $region76: #{tpu_custom_call.1} parent=71 // pred_fallthru
          _
      $region72: #{tpu_custom_call.1} parent=5 // pred_fallthru
        _
    $region6: #{tpu_custom_call.1} parent=1 // loop_footer
      %s25 = sadd.s32 1, %s21
    $region7: #{tpu_custom_call.1} parent=1 // loop_footer_branch
      %20 = sbr.rel target = $region3
    $region8: #{tpu_custom_call.1} parent=1 // loop_exit
      _
    %2247 = vsyncpa [#allocation3], 1
    %s2248 = scalar_lea.sflag [#allocation3], 1
    %2249 = vsyncpa %s2248, 1
    %2250 = vsyncpa [#allocation6], 1
    %2251 = vsyncpa [#allocation9], 1
    %2252 = vsyncpa [#allocation4], 1
    %s2253 = scalar_lea.sflag [#allocation4], 1
    %2254 = vsyncpa %s2253, 1

</llo_original>
